<compile_context>
chip_gen: v7x
topology: tpu7x:2x2x1
jax: 0.10.0
libtpu: 0.0.40
codegen_flags: <defaults>
</compile_context>

<pallas_src>
import jax
import jax.numpy as jnp
from jax.experimental import pallas as pl
from jax.experimental.pallas import tpu as pltpu


def _rnn_chunk_kernel(x_ref, h0_ref, w_h_ref, w_in_ref, b_h_ref, w_out_ref,
                      b_out_ref, h_seq_ref, y_seq_ref, h_carry, inp_buf):
    chunk = pl.program_id(0)
    Tt = x_ref.shape[0]
    N = h0_ref.shape[-1]

    @pl.when(chunk == 0)
    def _init():
        h_carry[...] = h0_ref[...]

    # Hoisted rank-1 input projection + bias for the whole chunk (VPU only):
    #   inp[t] = x[t] * w_in_row + b_h
    # Parked in VMEM scratch so the recurrent loop does no broadcasts.
    inp_buf[...] = (x_ref[...] * w_in_ref[...].reshape(1, 1, N)
                    + b_h_ref[...].reshape(1, 1, N))

    w_h = w_h_ref[...]          # (N, N)  resident, loaded once per chunk
    w_out_row = w_out_ref[...]  # (1, N)
    b_out = b_out_ref[...]      # (1, Nout)

    def step(t, h_prev):
        # Recurrent projection: the only MXU work per step.
        pre = jnp.dot(h_prev.astype(w_h.dtype), w_h,
                      preferred_element_type=jnp.float32) + inp_buf[t]
        h = jnp.tanh(pre)                                   # f32 activation path
        h_seq_ref[t] = h.astype(h_seq_ref.dtype)
        # Nout == 1 readout: XLU lane-reduce instead of a one-column MXU dot.
        y = jnp.sum(h * w_out_row, axis=-1, keepdims=True) + b_out
        y_seq_ref[t] = y.astype(y_seq_ref.dtype)
        return h

    h_last = jax.lax.fori_loop(0, Tt, step, h_carry[...], unroll=True)
    h_carry[...] = h_last


def _pick_time_block(T, time_block):
    # Largest divisor of T that is <= time_block (>= 1).
    return max(d for d in range(1, min(time_block, T) + 1) if T % d == 0)


def vanilla_rnn_sequence(x_seq, h0, params, time_block=8):
    """Run the RNN over a whole sequence inside one Pallas kernel.

    x_seq: (T, B, Nin) f32, h0: (B, N) f32
    returns (h_seq: (T, B, N) f32, y_seq: (T, B, Nout) f32)
    """
    T, B, Nin = x_seq.shape
    N = h0.shape[-1]
    Nout = params["b_out_row"].shape[-1]
    assert Nin == 1 and Nout == 1, "kernel is specialized to the module's Nin=Nout=1"

    Tt = _pick_time_block(T, time_block)
    num_chunks = T // Tt

    grid_spec = pltpu.PrefetchScalarGridSpec(
        num_scalar_prefetch=0,
        grid=(num_chunks,),
        in_specs=[
            pl.BlockSpec((Tt, B, Nin), lambda c: (c, 0, 0)),   # x chunk (streamed)
            pl.BlockSpec((B, N), lambda c: (0, 0)),            # h0 (resident)
            pl.BlockSpec((N, N), lambda c: (0, 0)),            # W_h^T (resident)
            pl.BlockSpec((Nin, N), lambda c: (0, 0)),          # w_in row (resident)
            pl.BlockSpec((1, N), lambda c: (0, 0)),            # b_h (resident)
            pl.BlockSpec((Nout, N), lambda c: (0, 0)),         # w_out row (resident)
            pl.BlockSpec((1, Nout), lambda c: (0, 0)),         # b_out (resident)
        ],
        out_specs=(
            pl.BlockSpec((Tt, B, N), lambda c: (c, 0, 0)),     # h per chunk
            pl.BlockSpec((Tt, B, Nout), lambda c: (c, 0, 0)),  # y per chunk
        ),
        scratch_shapes=[
            pltpu.VMEM((B, N), jnp.float32),       # recurrent carry across chunks
            pltpu.VMEM((Tt, B, N), jnp.float32),   # hoisted per-chunk input proj
        ],
    )

    h_seq, y_seq = pl.pallas_call(
        _rnn_chunk_kernel,
        out_shape=(jax.ShapeDtypeStruct((T, B, N), jnp.float32),
                   jax.ShapeDtypeStruct((T, B, Nout), jnp.float32)),
        grid_spec=grid_spec,
        compiler_params=pltpu.CompilerParams(
            dimension_semantics=("arbitrary",)),   # recurrence is sequential in T
    )(x_seq, h0, params["w_h_t"], params["w_in_row"], params["b_h_row"],
      params["w_out_row"], params["b_out_row"])
    return h_seq, y_seq


def vanilla_rnn_forward(x, h_prev, params):
    """Single-step forward with the PyTorch module signature: x (Nin,), h_prev (N,)."""
    h_seq, y_seq = vanilla_rnn_sequence(
        x.reshape(1, 1, -1), h_prev.reshape(1, -1), params, time_block=1)
    return h_seq[0, 0], y_seq[0, 0]


def init_params(key, Nin, N, Nout, weight_dtype=jnp.float32):
    k1, k2, k3, k4, k5 = jax.random.split(key, 5)
    W_in = jax.random.normal(k1, (N, Nin), jnp.float32) / jnp.sqrt(Nin)
    W_h = jax.random.normal(k2, (N, N), jnp.float32) / jnp.sqrt(N)
    W_out = jax.random.normal(k3, (Nout, N), jnp.float32) / jnp.sqrt(N)
    # PyTorch init is zeros; use small random biases here to exercise the path.
    b_h = 0.1 * jax.random.normal(k4, (N,), jnp.float32)
    b_out = 0.1 * jax.random.normal(k5, (Nout,), jnp.float32)

    return {
        # Kernel-format params: transposes / reshapes / casts hoisted (done once).
        "w_h_t": W_h.T.astype(weight_dtype),        # (N, N), MXU operand
        "w_in_row": W_in.T.astype(jnp.float32),     # (Nin, N), VPU rank-1 row
        "b_h_row": b_h.reshape(1, N),               # f32
        "w_out_row": W_out.astype(jnp.float32),     # (Nout, N), XLU reduce row
        "b_out_row": b_out.reshape(1, Nout),        # f32
        # Raw module-format params (reference check only).
        "W_in": W_in, "W_h": W_h, "b_h": b_h, "W_out": W_out, "b_out": b_out,
    }


def reference_sequence(x_seq, h0, params):
    """Pure-JAX reference with the PyTorch per-step math (batched).

    Emulates the kernel's weight-dtype rounding on the recurrent matmul
    (a no-op for the default float32 weights)."""
    hp = jax.lax.Precision.HIGHEST
    wdt = params["w_h_t"].dtype
    w_h_t = params["w_h_t"].astype(jnp.float32)     # quantized W_h^T, back to f32
    W_in, W_out = params["W_in"], params["W_out"]
    b_h, b_out = params["b_h"], params["b_out"]

    h = h0
    hs, ys = [], []
    for t in range(x_seq.shape[0]):
        rec = jnp.dot(h.astype(wdt).astype(jnp.float32), w_h_t, precision=hp)
        h = jnp.tanh(jnp.dot(x_seq[t], W_in.T, precision=hp) + rec + b_h)
        y = jnp.dot(h, W_out.T, precision=hp) + b_out
        hs.append(h)
        ys.append(y)
    return jnp.stack(hs), jnp.stack(ys)


if __name__ == "__main__":
    # Module spec fixes Nin = Nout = 1; N is a constructor choice -> 128 so the
    # hidden state is lane-dense.  B=8 fills f32 sublanes; T=16 runs as two
    # time-blocked chunks of Tt=8 steps each (exercises the cross-chunk carry).
    Nin, N, Nout = 1, 128, 1
    B, T = 8, 16

    key = jax.random.PRNGKey(0)
    kp, kx, kh = jax.random.split(key, 3)
    params = init_params(kp, Nin, N, Nout)
    x_seq = jax.random.normal(kx, (T, B, Nin), jnp.float32)
    h0 = jax.random.normal(kh, (B, N), jnp.float32)

    # Batched sequence path (time loop blocked and run inside the kernel).
    run = jax.jit(lambda x, h: vanilla_rnn_sequence(x, h, params, time_block=8))
    h_seq, y_seq = run(x_seq, h0)
    jax.block_until_ready((h_seq, y_seq))

    h_ref, y_ref = reference_sequence(x_seq, h0, params)
    assert jnp.allclose(h_seq, h_ref, atol=2e-3, rtol=2e-3), "h_seq mismatch"
    assert jnp.allclose(y_seq, y_ref, atol=2e-3, rtol=2e-3), "y_seq mismatch"

    # Single-step path with the exact PyTorch forward signature.
    h1, y1 = jax.jit(vanilla_rnn_forward)(x_seq[0, 0], h0[0], params)
    jax.block_until_ready((h1, y1))
    assert jnp.allclose(h1, h_ref[0, 0], atol=2e-3, rtol=2e-3), "h step mismatch"
    assert jnp.allclose(y1, y_ref[0, 0], atol=2e-3, rtol=2e-3), "y step mismatch"

    print("KERNEL_OK")
</pallas_src>

<mosaic_0001>
module attributes {stable_mosaic.version = 11 : i64} {
  func.func @_rnn_chunk_kernel(%arg0: i32, %arg1: memref<8x8x1xf32, #tpu.memory_space<vmem>>, %arg2: memref<8x128xf32, #tpu.memory_space<vmem>>, %arg3: memref<128x128xf32, #tpu.memory_space<vmem>>, %arg4: memref<1x128xf32, #tpu.memory_space<vmem>>, %arg5: memref<1x128xf32, #tpu.memory_space<vmem>>, %arg6: memref<1x128xf32, #tpu.memory_space<vmem>>, %arg7: memref<1x1xf32, #tpu.memory_space<vmem>>, %arg8: memref<8x8x128xf32, #tpu.memory_space<vmem>>, %arg9: memref<8x8x1xf32, #tpu.memory_space<vmem>>, %arg10: memref<8x128xf32, #tpu.memory_space<vmem>>, %arg11: memref<8x8x128xf32, #tpu.memory_space<vmem>>) attributes {dimension_semantics = [#tpu.dimension_semantics<arbitrary>], iteration_bounds = array<i64: 2>, scalar_prefetch = 0 : i64, scratch_operands = 2 : i64, tpu.core_type = #tpu.core_type<tc>, window_params = [{transform_indices = @transform_0, window_bounds = array<i64: 8, 8, 1>}, {pipeline_mode = #tpu.pipeline_mode<synchronous>, transform_indices = @transform_1, window_bounds = array<i64: 8, 128>}, {pipeline_mode = #tpu.pipeline_mode<synchronous>, transform_indices = @transform_2, window_bounds = array<i64: 128, 128>}, {pipeline_mode = #tpu.pipeline_mode<synchronous>, transform_indices = @transform_3, window_bounds = array<i64: 1, 128>}, {pipeline_mode = #tpu.pipeline_mode<synchronous>, transform_indices = @transform_4, window_bounds = array<i64: 1, 128>}, {pipeline_mode = #tpu.pipeline_mode<synchronous>, transform_indices = @transform_5, window_bounds = array<i64: 1, 128>}, {pipeline_mode = #tpu.pipeline_mode<synchronous>, transform_indices = @transform_6, window_bounds = array<i64: 1, 1>}, {transform_indices = @transform_7, window_bounds = array<i64: 8, 8, 128>}, {transform_indices = @transform_8, window_bounds = array<i64: 8, 8, 1>}]} {
    %c0_i32 = arith.constant 0 : i32
    %0 = arith.cmpi eq, %arg0, %c0_i32 : i32
    %1 = arith.extui %0 : i1 to i32
    %c0_i32_0 = arith.constant 0 : i32
    %2 = arith.cmpi ne, %1, %c0_i32_0 : i32
    scf.if %2 {
      %c0_84 = arith.constant 0 : index
      %c0_85 = arith.constant 0 : index
      %179 = vector.load %arg2[%c0_84, %c0_85] : memref<8x128xf32, #tpu.memory_space<vmem>>, vector<8x128xf32>
      %c0_86 = arith.constant 0 : index
      %c0_87 = arith.constant 0 : index
      %180 = vector.load %arg10[%c0_86, %c0_87] : memref<8x128xf32, #tpu.memory_space<vmem>>, vector<8x128xf32>
      tpu.vector_store %arg10[%c0_86, %c0_87], %179 {strides = array<i32>} : memref<8x128xf32, #tpu.memory_space<vmem>>, vector<8x128xf32>,
    } else {
    }
    %c0 = arith.constant 0 : index
    %c0_1 = arith.constant 0 : index
    %c0_2 = arith.constant 0 : index
    %3 = vector.load %arg1[%c0, %c0_1, %c0_2] : memref<8x8x1xf32, #tpu.memory_space<vmem>>, vector<8x8x1xf32>
    %c0_3 = arith.constant 0 : index
    %c0_4 = arith.constant 0 : index
    %4 = vector.load %arg4[%c0_3, %c0_4] : memref<1x128xf32, #tpu.memory_space<vmem>>, vector<1x128xf32>
    %5 = vector.shape_cast %4 : vector<1x128xf32> to vector<1x1x128xf32>
    %6 = vector.broadcast %3 : vector<8x8x1xf32> to vector<8x8x128xf32>
    %7 = vector.broadcast %5 : vector<1x1x128xf32> to vector<8x8x128xf32>
    %8 = arith.mulf %6, %7 : vector<8x8x128xf32>
    %c0_5 = arith.constant 0 : index
    %c0_6 = arith.constant 0 : index
    %9 = vector.load %arg5[%c0_5, %c0_6] : memref<1x128xf32, #tpu.memory_space<vmem>>, vector<1x128xf32>
    %10 = vector.shape_cast %9 : vector<1x128xf32> to vector<1x1x128xf32>
    %11 = vector.broadcast %10 : vector<1x1x128xf32> to vector<8x8x128xf32>
    %12 = arith.addf %8, %11 : vector<8x8x128xf32>
    %c0_7 = arith.constant 0 : index
    %c0_8 = arith.constant 0 : index
    %c0_9 = arith.constant 0 : index
    %13 = vector.load %arg11[%c0_7, %c0_8, %c0_9] : memref<8x8x128xf32, #tpu.memory_space<vmem>>, vector<8x8x128xf32>
    tpu.vector_store %arg11[%c0_7, %c0_8, %c0_9], %12 {strides = array<i32>} : memref<8x8x128xf32, #tpu.memory_space<vmem>>, vector<8x8x128xf32>,
    %c0_10 = arith.constant 0 : index
    %c0_11 = arith.constant 0 : index
    %14 = vector.load %arg3[%c0_10, %c0_11] : memref<128x128xf32, #tpu.memory_space<vmem>>, vector<128x128xf32>
    %c0_12 = arith.constant 0 : index
    %c0_13 = arith.constant 0 : index
    %15 = vector.load %arg6[%c0_12, %c0_13] : memref<1x128xf32, #tpu.memory_space<vmem>>, vector<1x128xf32>
    %c0_14 = arith.constant 0 : index
    %c0_15 = arith.constant 0 : index
    %16 = vector.load %arg7[%c0_14, %c0_15] : memref<1x1xf32, #tpu.memory_space<vmem>>, vector<1x1xf32>
    %c0_16 = arith.constant 0 : index
    %c0_17 = arith.constant 0 : index
    %17 = vector.load %arg10[%c0_16, %c0_17] : memref<8x128xf32, #tpu.memory_space<vmem>>, vector<8x128xf32>
    %c0_i32_18 = arith.constant 0 : i32
    %cst = arith.constant dense<0.000000e+00> : vector<8x128xf32>
    %18 = tpu.matmul %17, %14, %cst {dimension_numbers = #tpu.dot_dimension_numbers<[1], [0], [0], [1], [0, 0, 1, 1], [], []>} : vector<8x128xf32>, vector<128x128xf32>, vector<8x128xf32> -> vector<8x128xf32>
    %19 = arith.index_cast %c0_i32_18 : i32 to index
    %c0_19 = arith.constant 0 : index
    %c0_20 = arith.constant 0 : index
    %20 = vector.load %arg11[%19, %c0_19, %c0_20] : memref<8x8x128xf32, #tpu.memory_space<vmem>>, vector<1x8x128xf32>
    %21 = vector.shape_cast %20 : vector<1x8x128xf32> to vector<8x128xf32>
    %22 = arith.addf %18, %21 : vector<8x128xf32>
    %23 = math.tanh %22 : vector<8x128xf32>
    %24 = arith.index_cast %c0_i32_18 : i32 to index
    %c0_21 = arith.constant 0 : index
    %c0_22 = arith.constant 0 : index
    %25 = vector.load %arg8[%24, %c0_21, %c0_22] : memref<8x8x128xf32, #tpu.memory_space<vmem>>, vector<1x8x128xf32>
    %26 = vector.shape_cast %25 : vector<1x8x128xf32> to vector<8x128xf32>
    %27 = vector.shape_cast %23 : vector<8x128xf32> to vector<1x8x128xf32>
    tpu.vector_store %arg8[%24, %c0_21, %c0_22], %27 {strides = array<i32>} : memref<8x8x128xf32, #tpu.memory_space<vmem>>, vector<1x8x128xf32>,
    %28 = vector.broadcast %15 : vector<1x128xf32> to vector<8x128xf32>
    %29 = arith.mulf %23, %28 : vector<8x128xf32>
    %cst_23 = arith.constant dense<0.000000e+00> : vector<8xf32>
    %30 = vector.multi_reduction <add>, %29, %cst_23 [1] : vector<8x128xf32> to vector<8xf32>
    %31 = vector.shape_cast %30 : vector<8xf32> to vector<8x1xf32>
    %32 = vector.broadcast %16 : vector<1x1xf32> to vector<8x1xf32>
    %33 = arith.addf %31, %32 : vector<8x1xf32>
    %34 = arith.index_cast %c0_i32_18 : i32 to index
    %c0_24 = arith.constant 0 : index
    %c0_25 = arith.constant 0 : index
    %35 = vector.load %arg9[%34, %c0_24, %c0_25] : memref<8x8x1xf32, #tpu.memory_space<vmem>>, vector<1x8x1xf32>
    %36 = vector.shape_cast %35 : vector<1x8x1xf32> to vector<8x1xf32>
    %37 = vector.shape_cast %33 : vector<8x1xf32> to vector<1x8x1xf32>
    tpu.vector_store %arg9[%34, %c0_24, %c0_25], %37 {strides = array<i32>} : memref<8x8x1xf32, #tpu.memory_space<vmem>>, vector<1x8x1xf32>,
    %c1_i32 = arith.constant 1 : i32
    %cst_26 = arith.constant dense<0.000000e+00> : vector<8x128xf32>
    %38 = tpu.matmul %23, %14, %cst_26 {dimension_numbers = #tpu.dot_dimension_numbers<[1], [0], [0], [1], [0, 0, 1, 1], [], []>} : vector<8x128xf32>, vector<128x128xf32>, vector<8x128xf32> -> vector<8x128xf32>
    %39 = arith.index_cast %c1_i32 : i32 to index
    %c0_27 = arith.constant 0 : index
    %c0_28 = arith.constant 0 : index
    %40 = vector.load %arg11[%39, %c0_27, %c0_28] : memref<8x8x128xf32, #tpu.memory_space<vmem>>, vector<1x8x128xf32>
    %41 = vector.shape_cast %40 : vector<1x8x128xf32> to vector<8x128xf32>
    %42 = arith.addf %38, %41 : vector<8x128xf32>
    %43 = math.tanh %42 : vector<8x128xf32>
    %44 = arith.index_cast %c1_i32 : i32 to index
    %c0_29 = arith.constant 0 : index
    %c0_30 = arith.constant 0 : index
    %45 = vector.load %arg8[%44, %c0_29, %c0_30] : memref<8x8x128xf32, #tpu.memory_space<vmem>>, vector<1x8x128xf32>
    %46 = vector.shape_cast %45 : vector<1x8x128xf32> to vector<8x128xf32>
    %47 = vector.shape_cast %43 : vector<8x128xf32> to vector<1x8x128xf32>
    tpu.vector_store %arg8[%44, %c0_29, %c0_30], %47 {strides = array<i32>} : memref<8x8x128xf32, #tpu.memory_space<vmem>>, vector<1x8x128xf32>,
    %48 = vector.broadcast %15 : vector<1x128xf32> to vector<8x128xf32>
    %49 = arith.mulf %43, %48 : vector<8x128xf32>
    %cst_31 = arith.constant dense<0.000000e+00> : vector<8xf32>
    %50 = vector.multi_reduction <add>, %49, %cst_31 [1] : vector<8x128xf32> to vector<8xf32>
    %51 = vector.shape_cast %50 : vector<8xf32> to vector<8x1xf32>
    %52 = vector.broadcast %16 : vector<1x1xf32> to vector<8x1xf32>
    %53 = arith.addf %51, %52 : vector<8x1xf32>
    %54 = arith.index_cast %c1_i32 : i32 to index
    %c0_32 = arith.constant 0 : index
    %c0_33 = arith.constant 0 : index
    %55 = vector.load %arg9[%54, %c0_32, %c0_33] : memref<8x8x1xf32, #tpu.memory_space<vmem>>, vector<1x8x1xf32>
    %56 = vector.shape_cast %55 : vector<1x8x1xf32> to vector<8x1xf32>
    %57 = vector.shape_cast %53 : vector<8x1xf32> to vector<1x8x1xf32>
    tpu.vector_store %arg9[%54, %c0_32, %c0_33], %57 {strides = array<i32>} : memref<8x8x1xf32, #tpu.memory_space<vmem>>, vector<1x8x1xf32>,
    %c2_i32 = arith.constant 2 : i32
    %cst_34 = arith.constant dense<0.000000e+00> : vector<8x128xf32>
    %58 = tpu.matmul %43, %14, %cst_34 {dimension_numbers = #tpu.dot_dimension_numbers<[1], [0], [0], [1], [0, 0, 1, 1], [], []>} : vector<8x128xf32>, vector<128x128xf32>, vector<8x128xf32> -> vector<8x128xf32>
    %59 = arith.index_cast %c2_i32 : i32 to index
    %c0_35 = arith.constant 0 : index
    %c0_36 = arith.constant 0 : index
    %60 = vector.load %arg11[%59, %c0_35, %c0_36] : memref<8x8x128xf32, #tpu.memory_space<vmem>>, vector<1x8x128xf32>
    %61 = vector.shape_cast %60 : vector<1x8x128xf32> to vector<8x128xf32>
    %62 = arith.addf %58, %61 : vector<8x128xf32>
    %63 = math.tanh %62 : vector<8x128xf32>
    %64 = arith.index_cast %c2_i32 : i32 to index
    %c0_37 = arith.constant 0 : index
    %c0_38 = arith.constant 0 : index
    %65 = vector.load %arg8[%64, %c0_37, %c0_38] : memref<8x8x128xf32, #tpu.memory_space<vmem>>, vector<1x8x128xf32>
    %66 = vector.shape_cast %65 : vector<1x8x128xf32> to vector<8x128xf32>
    %67 = vector.shape_cast %63 : vector<8x128xf32> to vector<1x8x128xf32>
    tpu.vector_store %arg8[%64, %c0_37, %c0_38], %67 {strides = array<i32>} : memref<8x8x128xf32, #tpu.memory_space<vmem>>, vector<1x8x128xf32>,
    %68 = vector.broadcast %15 : vector<1x128xf32> to vector<8x128xf32>
    %69 = arith.mulf %63, %68 : vector<8x128xf32>
    %cst_39 = arith.constant dense<0.000000e+00> : vector<8xf32>
    %70 = vector.multi_reduction <add>, %69, %cst_39 [1] : vector<8x128xf32> to vector<8xf32>
    %71 = vector.shape_cast %70 : vector<8xf32> to vector<8x1xf32>
    %72 = vector.broadcast %16 : vector<1x1xf32> to vector<8x1xf32>
    %73 = arith.addf %71, %72 : vector<8x1xf32>
    %74 = arith.index_cast %c2_i32 : i32 to index
    %c0_40 = arith.constant 0 : index
    %c0_41 = arith.constant 0 : index
    %75 = vector.load %arg9[%74, %c0_40, %c0_41] : memref<8x8x1xf32, #tpu.memory_space<vmem>>, vector<1x8x1xf32>
    %76 = vector.shape_cast %75 : vector<1x8x1xf32> to vector<8x1xf32>
    %77 = vector.shape_cast %73 : vector<8x1xf32> to vector<1x8x1xf32>
    tpu.vector_store %arg9[%74, %c0_40, %c0_41], %77 {strides = array<i32>} : memref<8x8x1xf32, #tpu.memory_space<vmem>>, vector<1x8x1xf32>,
    %c3_i32 = arith.constant 3 : i32
    %cst_42 = arith.constant dense<0.000000e+00> : vector<8x128xf32>
    %78 = tpu.matmul %63, %14, %cst_42 {dimension_numbers = #tpu.dot_dimension_numbers<[1], [0], [0], [1], [0, 0, 1, 1], [], []>} : vector<8x128xf32>, vector<128x128xf32>, vector<8x128xf32> -> vector<8x128xf32>
    %79 = arith.index_cast %c3_i32 : i32 to index
    %c0_43 = arith.constant 0 : index
    %c0_44 = arith.constant 0 : index
    %80 = vector.load %arg11[%79, %c0_43, %c0_44] : memref<8x8x128xf32, #tpu.memory_space<vmem>>, vector<1x8x128xf32>
    %81 = vector.shape_cast %80 : vector<1x8x128xf32> to vector<8x128xf32>
    %82 = arith.addf %78, %81 : vector<8x128xf32>
    %83 = math.tanh %82 : vector<8x128xf32>
    %84 = arith.index_cast %c3_i32 : i32 to index
    %c0_45 = arith.constant 0 : index
    %c0_46 = arith.constant 0 : index
    %85 = vector.load %arg8[%84, %c0_45, %c0_46] : memref<8x8x128xf32, #tpu.memory_space<vmem>>, vector<1x8x128xf32>
    %86 = vector.shape_cast %85 : vector<1x8x128xf32> to vector<8x128xf32>
    %87 = vector.shape_cast %83 : vector<8x128xf32> to vector<1x8x128xf32>
    tpu.vector_store %arg8[%84, %c0_45, %c0_46], %87 {strides = array<i32>} : memref<8x8x128xf32, #tpu.memory_space<vmem>>, vector<1x8x128xf32>,
    %88 = vector.broadcast %15 : vector<1x128xf32> to vector<8x128xf32>
    %89 = arith.mulf %83, %88 : vector<8x128xf32>
    %cst_47 = arith.constant dense<0.000000e+00> : vector<8xf32>
    %90 = vector.multi_reduction <add>, %89, %cst_47 [1] : vector<8x128xf32> to vector<8xf32>
    %91 = vector.shape_cast %90 : vector<8xf32> to vector<8x1xf32>
    %92 = vector.broadcast %16 : vector<1x1xf32> to vector<8x1xf32>
    %93 = arith.addf %91, %92 : vector<8x1xf32>
    %94 = arith.index_cast %c3_i32 : i32 to index
    %c0_48 = arith.constant 0 : index
    %c0_49 = arith.constant 0 : index
    %95 = vector.load %arg9[%94, %c0_48, %c0_49] : memref<8x8x1xf32, #tpu.memory_space<vmem>>, vector<1x8x1xf32>
    %96 = vector.shape_cast %95 : vector<1x8x1xf32> to vector<8x1xf32>
    %97 = vector.shape_cast %93 : vector<8x1xf32> to vector<1x8x1xf32>
    tpu.vector_store %arg9[%94, %c0_48, %c0_49], %97 {strides = array<i32>} : memref<8x8x1xf32, #tpu.memory_space<vmem>>, vector<1x8x1xf32>,
    %c4_i32 = arith.constant 4 : i32
    %cst_50 = arith.constant dense<0.000000e+00> : vector<8x128xf32>
    %98 = tpu.matmul %83, %14, %cst_50 {dimension_numbers = #tpu.dot_dimension_numbers<[1], [0], [0], [1], [0, 0, 1, 1], [], []>} : vector<8x128xf32>, vector<128x128xf32>, vector<8x128xf32> -> vector<8x128xf32>
    %99 = arith.index_cast %c4_i32 : i32 to index
    %c0_51 = arith.constant 0 : index
    %c0_52 = arith.constant 0 : index
    %100 = vector.load %arg11[%99, %c0_51, %c0_52] : memref<8x8x128xf32, #tpu.memory_space<vmem>>, vector<1x8x128xf32>
    %101 = vector.shape_cast %100 : vector<1x8x128xf32> to vector<8x128xf32>
    %102 = arith.addf %98, %101 : vector<8x128xf32>
    %103 = math.tanh %102 : vector<8x128xf32>
    %104 = arith.index_cast %c4_i32 : i32 to index
    %c0_53 = arith.constant 0 : index
    %c0_54 = arith.constant 0 : index
    %105 = vector.load %arg8[%104, %c0_53, %c0_54] : memref<8x8x128xf32, #tpu.memory_space<vmem>>, vector<1x8x128xf32>
    %106 = vector.shape_cast %105 : vector<1x8x128xf32> to vector<8x128xf32>
    %107 = vector.shape_cast %103 : vector<8x128xf32> to vector<1x8x128xf32>
    tpu.vector_store %arg8[%104, %c0_53, %c0_54], %107 {strides = array<i32>} : memref<8x8x128xf32, #tpu.memory_space<vmem>>, vector<1x8x128xf32>,
    %108 = vector.broadcast %15 : vector<1x128xf32> to vector<8x128xf32>
    %109 = arith.mulf %103, %108 : vector<8x128xf32>
    %cst_55 = arith.constant dense<0.000000e+00> : vector<8xf32>
    %110 = vector.multi_reduction <add>, %109, %cst_55 [1] : vector<8x128xf32> to vector<8xf32>
    %111 = vector.shape_cast %110 : vector<8xf32> to vector<8x1xf32>
    %112 = vector.broadcast %16 : vector<1x1xf32> to vector<8x1xf32>
    %113 = arith.addf %111, %112 : vector<8x1xf32>
    %114 = arith.index_cast %c4_i32 : i32 to index
    %c0_56 = arith.constant 0 : index
    %c0_57 = arith.constant 0 : index
    %115 = vector.load %arg9[%114, %c0_56, %c0_57] : memref<8x8x1xf32, #tpu.memory_space<vmem>>, vector<1x8x1xf32>
    %116 = vector.shape_cast %115 : vector<1x8x1xf32> to vector<8x1xf32>
    %117 = vector.shape_cast %113 : vector<8x1xf32> to vector<1x8x1xf32>
    tpu.vector_store %arg9[%114, %c0_56, %c0_57], %117 {strides = array<i32>} : memref<8x8x1xf32, #tpu.memory_space<vmem>>, vector<1x8x1xf32>,
    %c5_i32 = arith.constant 5 : i32
    %cst_58 = arith.constant dense<0.000000e+00> : vector<8x128xf32>
    %118 = tpu.matmul %103, %14, %cst_58 {dimension_numbers = #tpu.dot_dimension_numbers<[1], [0], [0], [1], [0, 0, 1, 1], [], []>} : vector<8x128xf32>, vector<128x128xf32>, vector<8x128xf32> -> vector<8x128xf32>
    %119 = arith.index_cast %c5_i32 : i32 to index
    %c0_59 = arith.constant 0 : index
    %c0_60 = arith.constant 0 : index
    %120 = vector.load %arg11[%119, %c0_59, %c0_60] : memref<8x8x128xf32, #tpu.memory_space<vmem>>, vector<1x8x128xf32>
    %121 = vector.shape_cast %120 : vector<1x8x128xf32> to vector<8x128xf32>
    %122 = arith.addf %118, %121 : vector<8x128xf32>
    %123 = math.tanh %122 : vector<8x128xf32>
    %124 = arith.index_cast %c5_i32 : i32 to index
    %c0_61 = arith.constant 0 : index
    %c0_62 = arith.constant 0 : index
    %125 = vector.load %arg8[%124, %c0_61, %c0_62] : memref<8x8x128xf32, #tpu.memory_space<vmem>>, vector<1x8x128xf32>
    %126 = vector.shape_cast %125 : vector<1x8x128xf32> to vector<8x128xf32>
    %127 = vector.shape_cast %123 : vector<8x128xf32> to vector<1x8x128xf32>
    tpu.vector_store %arg8[%124, %c0_61, %c0_62], %127 {strides = array<i32>} : memref<8x8x128xf32, #tpu.memory_space<vmem>>, vector<1x8x128xf32>,
    %128 = vector.broadcast %15 : vector<1x128xf32> to vector<8x128xf32>
    %129 = arith.mulf %123, %128 : vector<8x128xf32>
    %cst_63 = arith.constant dense<0.000000e+00> : vector<8xf32>
    %130 = vector.multi_reduction <add>, %129, %cst_63 [1] : vector<8x128xf32> to vector<8xf32>
    %131 = vector.shape_cast %130 : vector<8xf32> to vector<8x1xf32>
    %132 = vector.broadcast %16 : vector<1x1xf32> to vector<8x1xf32>
    %133 = arith.addf %131, %132 : vector<8x1xf32>
    %134 = arith.index_cast %c5_i32 : i32 to index
    %c0_64 = arith.constant 0 : index
    %c0_65 = arith.constant 0 : index
    %135 = vector.load %arg9[%134, %c0_64, %c0_65] : memref<8x8x1xf32, #tpu.memory_space<vmem>>, vector<1x8x1xf32>
    %136 = vector.shape_cast %135 : vector<1x8x1xf32> to vector<8x1xf32>
    %137 = vector.shape_cast %133 : vector<8x1xf32> to vector<1x8x1xf32>
    tpu.vector_store %arg9[%134, %c0_64, %c0_65], %137 {strides = array<i32>} : memref<8x8x1xf32, #tpu.memory_space<vmem>>, vector<1x8x1xf32>,
    %c6_i32 = arith.constant 6 : i32
    %cst_66 = arith.constant dense<0.000000e+00> : vector<8x128xf32>
    %138 = tpu.matmul %123, %14, %cst_66 {dimension_numbers = #tpu.dot_dimension_numbers<[1], [0], [0], [1], [0, 0, 1, 1], [], []>} : vector<8x128xf32>, vector<128x128xf32>, vector<8x128xf32> -> vector<8x128xf32>
    %139 = arith.index_cast %c6_i32 : i32 to index
    %c0_67 = arith.constant 0 : index
    %c0_68 = arith.constant 0 : index
    %140 = vector.load %arg11[%139, %c0_67, %c0_68] : memref<8x8x128xf32, #tpu.memory_space<vmem>>, vector<1x8x128xf32>
    %141 = vector.shape_cast %140 : vector<1x8x128xf32> to vector<8x128xf32>
    %142 = arith.addf %138, %141 : vector<8x128xf32>
    %143 = math.tanh %142 : vector<8x128xf32>
    %144 = arith.index_cast %c6_i32 : i32 to index
    %c0_69 = arith.constant 0 : index
    %c0_70 = arith.constant 0 : index
    %145 = vector.load %arg8[%144, %c0_69, %c0_70] : memref<8x8x128xf32, #tpu.memory_space<vmem>>, vector<1x8x128xf32>
    %146 = vector.shape_cast %145 : vector<1x8x128xf32> to vector<8x128xf32>
    %147 = vector.shape_cast %143 : vector<8x128xf32> to vector<1x8x128xf32>
    tpu.vector_store %arg8[%144, %c0_69, %c0_70], %147 {strides = array<i32>} : memref<8x8x128xf32, #tpu.memory_space<vmem>>, vector<1x8x128xf32>,
    %148 = vector.broadcast %15 : vector<1x128xf32> to vector<8x128xf32>
    %149 = arith.mulf %143, %148 : vector<8x128xf32>
    %cst_71 = arith.constant dense<0.000000e+00> : vector<8xf32>
    %150 = vector.multi_reduction <add>, %149, %cst_71 [1] : vector<8x128xf32> to vector<8xf32>
    %151 = vector.shape_cast %150 : vector<8xf32> to vector<8x1xf32>
    %152 = vector.broadcast %16 : vector<1x1xf32> to vector<8x1xf32>
    %153 = arith.addf %151, %152 : vector<8x1xf32>
    %154 = arith.index_cast %c6_i32 : i32 to index
    %c0_72 = arith.constant 0 : index
    %c0_73 = arith.constant 0 : index
    %155 = vector.load %arg9[%154, %c0_72, %c0_73] : memref<8x8x1xf32, #tpu.memory_space<vmem>>, vector<1x8x1xf32>
    %156 = vector.shape_cast %155 : vector<1x8x1xf32> to vector<8x1xf32>
    %157 = vector.shape_cast %153 : vector<8x1xf32> to vector<1x8x1xf32>
    tpu.vector_store %arg9[%154, %c0_72, %c0_73], %157 {strides = array<i32>} : memref<8x8x1xf32, #tpu.memory_space<vmem>>, vector<1x8x1xf32>,
    %c7_i32 = arith.constant 7 : i32
    %cst_74 = arith.constant dense<0.000000e+00> : vector<8x128xf32>
    %158 = tpu.matmul %143, %14, %cst_74 {dimension_numbers = #tpu.dot_dimension_numbers<[1], [0], [0], [1], [0, 0, 1, 1], [], []>} : vector<8x128xf32>, vector<128x128xf32>, vector<8x128xf32> -> vector<8x128xf32>
    %159 = arith.index_cast %c7_i32 : i32 to index
    %c0_75 = arith.constant 0 : index
    %c0_76 = arith.constant 0 : index
    %160 = vector.load %arg11[%159, %c0_75, %c0_76] : memref<8x8x128xf32, #tpu.memory_space<vmem>>, vector<1x8x128xf32>
    %161 = vector.shape_cast %160 : vector<1x8x128xf32> to vector<8x128xf32>
    %162 = arith.addf %158, %161 : vector<8x128xf32>
    %163 = math.tanh %162 : vector<8x128xf32>
    %164 = arith.index_cast %c7_i32 : i32 to index
    %c0_77 = arith.constant 0 : index
    %c0_78 = arith.constant 0 : index
    %165 = vector.load %arg8[%164, %c0_77, %c0_78] : memref<8x8x128xf32, #tpu.memory_space<vmem>>, vector<1x8x128xf32>
    %166 = vector.shape_cast %165 : vector<1x8x128xf32> to vector<8x128xf32>
    %167 = vector.shape_cast %163 : vector<8x128xf32> to vector<1x8x128xf32>
    tpu.vector_store %arg8[%164, %c0_77, %c0_78], %167 {strides = array<i32>} : memref<8x8x128xf32, #tpu.memory_space<vmem>>, vector<1x8x128xf32>,
    %168 = vector.broadcast %15 : vector<1x128xf32> to vector<8x128xf32>
    %169 = arith.mulf %163, %168 : vector<8x128xf32>
    %cst_79 = arith.constant dense<0.000000e+00> : vector<8xf32>
    %170 = vector.multi_reduction <add>, %169, %cst_79 [1] : vector<8x128xf32> to vector<8xf32>
    %171 = vector.shape_cast %170 : vector<8xf32> to vector<8x1xf32>
    %172 = vector.broadcast %16 : vector<1x1xf32> to vector<8x1xf32>
    %173 = arith.addf %171, %172 : vector<8x1xf32>
    %174 = arith.index_cast %c7_i32 : i32 to index
    %c0_80 = arith.constant 0 : index
    %c0_81 = arith.constant 0 : index
    %175 = vector.load %arg9[%174, %c0_80, %c0_81] : memref<8x8x1xf32, #tpu.memory_space<vmem>>, vector<1x8x1xf32>
    %176 = vector.shape_cast %175 : vector<1x8x1xf32> to vector<8x1xf32>
    %177 = vector.shape_cast %173 : vector<8x1xf32> to vector<1x8x1xf32>
    tpu.vector_store %arg9[%174, %c0_80, %c0_81], %177 {strides = array<i32>} : memref<8x8x1xf32, #tpu.memory_space<vmem>>, vector<1x8x1xf32>,
    %c8_i32 = arith.constant 8 : i32
    %c0_82 = arith.constant 0 : index
    %c0_83 = arith.constant 0 : index
    %178 = vector.load %arg10[%c0_82, %c0_83] : memref<8x128xf32, #tpu.memory_space<vmem>>, vector<8x128xf32>
    tpu.vector_store %arg10[%c0_82, %c0_83], %163 {strides = array<i32>} : memref<8x128xf32, #tpu.memory_space<vmem>>, vector<8x128xf32>,
    return
  }
  func.func @transform_0(%arg0: i32) -> (i32, i32, i32) {
    %c0_i32 = arith.constant 0 : i32
    %c0_i32_0 = arith.constant 0 : i32
    %c0_i32_1 = arith.constant 0 : i32
    return %arg0, %c0_i32, %c0_i32_0 : i32, i32, i32
  }
  func.func @transform_1(%arg0: i32) -> (i32, i32) {
    %c0_i32 = arith.constant 0 : i32
    %c0_i32_0 = arith.constant 0 : i32
    %c0_i32_1 = arith.constant 0 : i32
    return %c0_i32, %c0_i32_0 : i32, i32
  }
  func.func @transform_2(%arg0: i32) -> (i32, i32) {
    %c0_i32 = arith.constant 0 : i32
    %c0_i32_0 = arith.constant 0 : i32
    %c0_i32_1 = arith.constant 0 : i32
    return %c0_i32, %c0_i32_0 : i32, i32
  }
  func.func @transform_3(%arg0: i32) -> (i32, i32) {
    %c0_i32 = arith.constant 0 : i32
    %c0_i32_0 = arith.constant 0 : i32
    %c0_i32_1 = arith.constant 0 : i32
    return %c0_i32, %c0_i32_0 : i32, i32
  }
  func.func @transform_4(%arg0: i32) -> (i32, i32) {
    %c0_i32 = arith.constant 0 : i32
    %c0_i32_0 = arith.constant 0 : i32
    %c0_i32_1 = arith.constant 0 : i32
    return %c0_i32, %c0_i32_0 : i32, i32
  }
  func.func @transform_5(%arg0: i32) -> (i32, i32) {
    %c0_i32 = arith.constant 0 : i32
    %c0_i32_0 = arith.constant 0 : i32
    %c0_i32_1 = arith.constant 0 : i32
    return %c0_i32, %c0_i32_0 : i32, i32
  }
  func.func @transform_6(%arg0: i32) -> (i32, i32) {
    %c0_i32 = arith.constant 0 : i32
    %c0_i32_0 = arith.constant 0 : i32
    %c0_i32_1 = arith.constant 0 : i32
    return %c0_i32, %c0_i32_0 : i32, i32
  }
  func.func @transform_7(%arg0: i32) -> (i32, i32, i32) {
    %c0_i32 = arith.constant 0 : i32
    %c0_i32_0 = arith.constant 0 : i32
    %c0_i32_1 = arith.constant 0 : i32
    return %arg0, %c0_i32, %c0_i32_0 : i32, i32, i32
  }
  func.func @transform_8(%arg0: i32) -> (i32, i32, i32) {
    %c0_i32 = arith.constant 0 : i32
    %c0_i32_0 = arith.constant 0 : i32
    %c0_i32_1 = arith.constant 0 : i32
    return %arg0, %c0_i32, %c0_i32_0 : i32, i32, i32
  }
}

</mosaic_0001>

<llo_original>
// kernel: _lambda_.1
$region0: #{_lambda_.1}
  #allocation0 [shape = 'u32[]', space=smem, size = 0x4, offset = 0x4, fixed_abs, tag = 'smem constant byte address 0x4 - core index']
  #allocation1 [shape = 'u32[144,128]{1,0:T(1,128)}', space=vmem, size = 0x12000, scoped, tag = 'internal scratch']
  #allocation2 [shape = 'f32[8,128]{1,0:T(8,128)}', space=vmem, size = 0x1000, scoped, tag = 'scratch operand']
  #allocation3 [shape = 'f32[8,8,128]{2,1,0:T(8,128)}', space=vmem, size = 0x8000, scoped, tag = 'scratch operand']
  #allocation4 [shape = 'f32[1,1]{1,0:T(1,128)S(1)}', space=vmem, size = 0x200, scoped, tag = 'scoped memory for _lambda_.1']
  %s0 = inlined_call_operand.vmem [shape: f32[16,8,1], index: 0, kind: input, shape index: {}]
  %s1 = inlined_call_operand.vmem [shape: f32[8,128], index: 1, kind: input, shape index: {}]
  %s2 = inlined_call_operand.vmem [shape: f32[128,128], index: 2, kind: input, shape index: {}]
  %s3 = inlined_call_operand.vmem [shape: f32[1,128], index: 3, kind: input, shape index: {}]
  %s4 = inlined_call_operand.vmem [shape: f32[1,128], index: 4, kind: input, shape index: {}]
  %s5 = inlined_call_operand.vmem [shape: f32[1,128], index: 5, kind: input, shape index: {}]
  %s6 = inlined_call_operand.<no memory space> [shape: f32[1,1], index: 6, kind: input, shape index: {}]
  %s7 = inlined_call_operand.hbm [shape: f32[16,8,128], index: 7, kind: output, shape index: {0}]
  %s8 = inlined_call_operand.vmem [shape: f32[16,8,1], index: 8, kind: output, shape index: {1}]
  %9 = xla_tuple %s7, %s8
  %s10 = sld [smem:[#allocation0]]
  $region73: #{_lambda_.1} parent=0
    _
  %s12 = ssub.s32 1, %s10
  %s13 = scalar_select 0, %s12, %s10
  %v14 = vstv %s6
  %15 = vst [vmem:[#allocation4] sm:$0x1] %v14
  $region1: #{_lambda_.1} parent=0
    #allocation5 [shape = 'u8[65536]{0}', space=vmem, size = 0x10000, scoped, tag = 'output window, operand 0']
    #allocation6 [shape = 's32[2]{0}', space=sflag, size = 0x8, scoped, tag = 'scoped memory for _lambda_.1']
    %16 = vsyncpa [#allocation6], 0
    %s17 = scalar_lea.sflag [#allocation6], 1
    %18 = vsyncpa %s17, 0
    loop: start=0, step=1, limit=4
    $region2: #{_lambda_.1} parent=1 // loop_pre_header
      _
    $region3: #{_lambda_.1} parent=1 // loop_header
      %s20 = sphi 0, %s24
      %p21 = scmp.ge.s32.totalorder %s20, 4
      %s30 = sphi 0, %s32
      %s33 = sphi 0, %s30
      %s34 = sphi 0, %s33
      %s50 = sphi 0, %s34
      %s54 = sphi 0, %s54
      %s56 = sphi 0, %s54
      %s57 = sphi 0, %s56
      %s71 = sphi 0, %s57
      %s75 = sphi 0, %s75
      %s77 = sphi 0, %s75
      %s78 = sphi 0, %s77
      %s92 = sphi 0, %s78
      %s96 = sphi 0, %s96
      %s98 = sphi 0, %s96
      %s99 = sphi 0, %s98
      %s113 = sphi 0, %s99
      %s117 = sphi 0, %s117
      %s119 = sphi 0, %s117
      %s120 = sphi 0, %s119
      %s134 = sphi 0, %s120
      %s138 = sphi 0, %s138
      %s140 = sphi 0, %s138
      %s141 = sphi 0, %s140
      %s155 = sphi 0, %s141
      %s159 = sphi 0, %s159
      %s161 = sphi 0, %s159
      %s162 = sphi 0, %s161
      %s176 = sphi 0, %s162
      %s182 = sphi 0, %s184
      %s185 = sphi 0, %s182
      %s186 = sphi 0, %s185
      %s202 = sphi 0, %s186
      %s208 = sphi 0, %s210
      %s211 = sphi 0, %s208
      %s212 = sphi 0, %s211
      %s228 = sphi 0, %s212
    $region4: #{_lambda_.1} parent=1 // loop_header_branch
      %23 = sbr.rel (%p21) target = $region8
    $region5: #{_lambda_.1} parent=1 // loop_body
      %s25 = ssub.s32 %s20, 1
      %s26 = ssub.s32 %s20, 2
      %s27 = sadd.s32 %s20, 1
      %s28 = ssub.s32 %s20, %s27
      %p29 = scmp.eq.s32.totalorder %s28, 0
      %s31 = sadd.s32 %s30, 1
      %s32 = scalar_select %p29, %s30, %s31
      %p35 = pneg %p29
      %p36 = scmp.eq.s32.totalorder %s20, 1
      %p37 = por %p35, %p36
      %p38 = scmp.ne.s32.totalorder %s30, %s33
      %p39 = scmp.eq.s32.totalorder %s20, 0
      %p40 = por %p38, %p39
      %p41 = scmp.ne.s32.totalorder %s30, %s33
      %p42 = scmp.eq.s32.totalorder %s25, 1
      %p43 = por %p41, %p42
      %p44 = scmp.ne.s32.totalorder %s33, %s34
      %p45 = scmp.eq.s32.totalorder %s25, 0
      %p46 = por %p44, %p45
      %p47 = scmp.ne.s32.totalorder %s33, %s34
      %p48 = scmp.eq.s32.totalorder %s26, 1
      %p49 = por %p47, %p48
      %p51 = scmp.ne.s32.totalorder %s34, %s50
      %p52 = scmp.eq.s32.totalorder %s26, 0
      %p53 = por %p51, %p52
      %s55 = sadd.s32 %s54, 1
      %p58 = scmp.eq.s32.totalorder %s20, 1
      %p59 = scmp.ne.s32.totalorder %s54, %s56
      %p60 = scmp.eq.s32.totalorder %s20, 0
      %p61 = por %p59, %p60
      %p62 = scmp.ne.s32.totalorder %s54, %s56
      %p63 = scmp.eq.s32.totalorder %s25, 1
      %p64 = por %p62, %p63
      %p65 = scmp.ne.s32.totalorder %s56, %s57
      %p66 = scmp.eq.s32.totalorder %s25, 0
      %p67 = por %p65, %p66
      %p68 = scmp.ne.s32.totalorder %s56, %s57
      %p69 = scmp.eq.s32.totalorder %s26, 1
      %p70 = por %p68, %p69
      %p72 = scmp.ne.s32.totalorder %s57, %s71
      %p73 = scmp.eq.s32.totalorder %s26, 0
      %p74 = por %p72, %p73
      %s76 = sadd.s32 %s75, 1
      %p79 = scmp.eq.s32.totalorder %s20, 1
      %p80 = scmp.ne.s32.totalorder %s75, %s77
      %p81 = scmp.eq.s32.totalorder %s20, 0
      %p82 = por %p80, %p81
      %p83 = scmp.ne.s32.totalorder %s75, %s77
      %p84 = scmp.eq.s32.totalorder %s25, 1
      %p85 = por %p83, %p84
      %p86 = scmp.ne.s32.totalorder %s77, %s78
      %p87 = scmp.eq.s32.totalorder %s25, 0
      %p88 = por %p86, %p87
      %p89 = scmp.ne.s32.totalorder %s77, %s78
      %p90 = scmp.eq.s32.totalorder %s26, 1
      %p91 = por %p89, %p90
      %p93 = scmp.ne.s32.totalorder %s78, %s92
      %p94 = scmp.eq.s32.totalorder %s26, 0
      %p95 = por %p93, %p94
      %s97 = sadd.s32 %s96, 1
      %p100 = scmp.eq.s32.totalorder %s20, 1
      %p101 = scmp.ne.s32.totalorder %s96, %s98
      %p102 = scmp.eq.s32.totalorder %s20, 0
      %p103 = por %p101, %p102
      %p104 = scmp.ne.s32.totalorder %s96, %s98
      %p105 = scmp.eq.s32.totalorder %s25, 1
      %p106 = por %p104, %p105
      %p107 = scmp.ne.s32.totalorder %s98, %s99
      %p108 = scmp.eq.s32.totalorder %s25, 0
      %p109 = por %p107, %p108
      %p110 = scmp.ne.s32.totalorder %s98, %s99
      %p111 = scmp.eq.s32.totalorder %s26, 1
      %p112 = por %p110, %p111
      %p114 = scmp.ne.s32.totalorder %s99, %s113
      %p115 = scmp.eq.s32.totalorder %s26, 0
      %p116 = por %p114, %p115
      %s118 = sadd.s32 %s117, 1
      %p121 = scmp.eq.s32.totalorder %s20, 1
      %p122 = scmp.ne.s32.totalorder %s117, %s119
      %p123 = scmp.eq.s32.totalorder %s20, 0
      %p124 = por %p122, %p123
      %p125 = scmp.ne.s32.totalorder %s117, %s119
      %p126 = scmp.eq.s32.totalorder %s25, 1
      %p127 = por %p125, %p126
      %p128 = scmp.ne.s32.totalorder %s119, %s120
      %p129 = scmp.eq.s32.totalorder %s25, 0
      %p130 = por %p128, %p129
      %p131 = scmp.ne.s32.totalorder %s119, %s120
      %p132 = scmp.eq.s32.totalorder %s26, 1
      %p133 = por %p131, %p132
      %p135 = scmp.ne.s32.totalorder %s120, %s134
      %p136 = scmp.eq.s32.totalorder %s26, 0
      %p137 = por %p135, %p136
      %s139 = sadd.s32 %s138, 1
      %p142 = scmp.eq.s32.totalorder %s20, 1
      %p143 = scmp.ne.s32.totalorder %s138, %s140
      %p144 = scmp.eq.s32.totalorder %s20, 0
      %p145 = por %p143, %p144
      %p146 = scmp.ne.s32.totalorder %s138, %s140
      %p147 = scmp.eq.s32.totalorder %s25, 1
      %p148 = por %p146, %p147
      %p149 = scmp.ne.s32.totalorder %s140, %s141
      %p150 = scmp.eq.s32.totalorder %s25, 0
      %p151 = por %p149, %p150
      %p152 = scmp.ne.s32.totalorder %s140, %s141
      %p153 = scmp.eq.s32.totalorder %s26, 1
      %p154 = por %p152, %p153
      %p156 = scmp.ne.s32.totalorder %s141, %s155
      %p157 = scmp.eq.s32.totalorder %s26, 0
      %p158 = por %p156, %p157
      %s160 = sadd.s32 %s159, 1
      %p163 = scmp.eq.s32.totalorder %s20, 1
      %p164 = scmp.ne.s32.totalorder %s159, %s161
      %p165 = scmp.eq.s32.totalorder %s20, 0
      %p166 = por %p164, %p165
      %p167 = scmp.ne.s32.totalorder %s159, %s161
      %p168 = scmp.eq.s32.totalorder %s25, 1
      %p169 = por %p167, %p168
      %p170 = scmp.ne.s32.totalorder %s161, %s162
      %p171 = scmp.eq.s32.totalorder %s25, 0
      %p172 = por %p170, %p171
      %p173 = scmp.ne.s32.totalorder %s161, %s162
      %p174 = scmp.eq.s32.totalorder %s26, 1
      %p175 = por %p173, %p174
      %p177 = scmp.ne.s32.totalorder %s162, %s176
      %p178 = scmp.eq.s32.totalorder %s26, 0
      %p179 = por %p177, %p178
      %s180 = ssub.s32 %s20, %s27
      %p181 = scmp.eq.s32.totalorder %s180, 0
      %s183 = sadd.s32 %s182, 1
      %s184 = scalar_select %p181, %s182, %s183
      %p187 = pneg %p181
      %p188 = scmp.eq.s32.totalorder %s20, 1
      %p189 = por %p187, %p188
      %p190 = scmp.ne.s32.totalorder %s182, %s185
      %p191 = scmp.eq.s32.totalorder %s20, 0
      %p192 = por %p190, %p191
      %p193 = scmp.ne.s32.totalorder %s182, %s185
      %p194 = scmp.eq.s32.totalorder %s25, 1
      %p195 = por %p193, %p194
      %p196 = scmp.ne.s32.totalorder %s185, %s186
      %p197 = scmp.eq.s32.totalorder %s25, 0
      %p198 = por %p196, %p197
      %p199 = scmp.ne.s32.totalorder %s185, %s186
      %p200 = scmp.eq.s32.totalorder %s26, 1
      %p201 = por %p199, %p200
      %p203 = scmp.ne.s32.totalorder %s186, %s202
      %p204 = scmp.eq.s32.totalorder %s26, 0
      %p205 = por %p203, %p204
      %s206 = ssub.s32 %s20, %s27
      %p207 = scmp.eq.s32.totalorder %s206, 0
      %s209 = sadd.s32 %s208, 1
      %s210 = scalar_select %p207, %s208, %s209
      %p213 = pneg %p207
      %p214 = scmp.eq.s32.totalorder %s20, 1
      %p215 = por %p213, %p214
      %p216 = scmp.ne.s32.totalorder %s208, %s211
      %p217 = scmp.eq.s32.totalorder %s20, 0
      %p218 = por %p216, %p217
      %p219 = scmp.ne.s32.totalorder %s208, %s211
      %p220 = scmp.eq.s32.totalorder %s25, 1
      %p221 = por %p219, %p220
      %p222 = scmp.ne.s32.totalorder %s211, %s212
      %p223 = scmp.eq.s32.totalorder %s25, 0
      %p224 = por %p222, %p223
      %p225 = scmp.ne.s32.totalorder %s211, %s212
      %p226 = scmp.eq.s32.totalorder %s26, 1
      %p227 = por %p225, %p226
      %p229 = scmp.ne.s32.totalorder %s212, %s228
      %p230 = scmp.eq.s32.totalorder %s26, 0
      %p231 = por %p229, %p230
      %p232 = scmp.le.s32.totalorder 1, %s20
      %p233 = scmp.lt.s32.totalorder %s20, 3
      %p234 = pnand %p232, %p233
      %p235 = pneg %p234
      // Predicated region
      $region9: #{_lambda_.1} parent=5 // pred_check
        _
      $region10: #{_lambda_.1} parent=5 // pred_check_branch
        %237 = sbr.rel (%p234) target = $region12
      $region11: #{_lambda_.1} parent=5 // pred_region
        %s238 = ssub.s32 %s20, 1
        // Predicated region
        $region13: #{_lambda_.1} parent=11 // pred_check
          %p239 = pneg %p67
        $region14: #{_lambda_.1} parent=11 // pred_check_branch
          %241 = sbr.rel (%p239) target = $region16
        $region15: #{_lambda_.1} parent=11 // pred_region
          _
        $region16: #{_lambda_.1} parent=11 // pred_fallthru
          _
        // Predicated region
        $region17: #{_lambda_.1} parent=11 // pred_check
          %p242 = pneg %p88
        $region18: #{_lambda_.1} parent=11 // pred_check_branch
          %244 = sbr.rel (%p242) target = $region20
        $region19: #{_lambda_.1} parent=11 // pred_region
          _
        $region20: #{_lambda_.1} parent=11 // pred_fallthru
          _
        // Predicated region
        $region21: #{_lambda_.1} parent=11 // pred_check
          %p245 = pneg %p109
        $region22: #{_lambda_.1} parent=11 // pred_check_branch
          %247 = sbr.rel (%p245) target = $region24
        $region23: #{_lambda_.1} parent=11 // pred_region
          _
        $region24: #{_lambda_.1} parent=11 // pred_fallthru
          _
        // Predicated region
        $region25: #{_lambda_.1} parent=11 // pred_check
          %p248 = pneg %p130
        $region26: #{_lambda_.1} parent=11 // pred_check_branch
          %250 = sbr.rel (%p248) target = $region28
        $region27: #{_lambda_.1} parent=11 // pred_region
          _
        $region28: #{_lambda_.1} parent=11 // pred_fallthru
          _
        // Predicated region
        $region29: #{_lambda_.1} parent=11 // pred_check
          %p251 = pneg %p151
        $region30: #{_lambda_.1} parent=11 // pred_check_branch
          %253 = sbr.rel (%p251) target = $region32
        $region31: #{_lambda_.1} parent=11 // pred_region
          _
        $region32: #{_lambda_.1} parent=11 // pred_fallthru
          _
        // Predicated region
        $region33: #{_lambda_.1} parent=11 // pred_check
          %p254 = pneg %p172
        $region34: #{_lambda_.1} parent=11 // pred_check_branch
          %256 = sbr.rel (%p254) target = $region36
        $region35: #{_lambda_.1} parent=11 // pred_region
          _
        $region36: #{_lambda_.1} parent=11 // pred_fallthru
          _
      $region12: #{_lambda_.1} parent=5 // pred_fallthru
        _
      %p257 = scmp.lt.s32.totalorder %s20, 2
      // Predicated region
      $region37: #{_lambda_.1} parent=5 // pred_check
        %p258 = pneg %p257
      $region38: #{_lambda_.1} parent=5 // pred_check_branch
        %260 = sbr.rel (%p258) target = $region40
      $region39: #{_lambda_.1} parent=5 // pred_region
        // Predicated region
        $region41: #{_lambda_.1} parent=39 // pred_check
          %p261 = pneg %p40
        $region42: #{_lambda_.1} parent=39 // pred_check_branch
          %263 = sbr.rel (%p261) target = $region44
        $region43: #{_lambda_.1} parent=39 // pred_region
          %s264 = smul.u32 8, %s20
          %p265 = scmp.lt.s32.totalorder %s264, 15
          %s266 = scalar_select %p265, %s264, 15
          %s267 = smul.addr %s266, 8
          %s268 = scalar_lea.vmem %s0, %s267
          %s269 = smul.u32 8, %s20
        $region44: #{_lambda_.1} parent=39 // pred_fallthru
          _
      $region40: #{_lambda_.1} parent=5 // pred_fallthru
        _
      %p270 = scmp.le.s32.totalorder 1, %s20
      %p271 = scmp.lt.s32.totalorder %s20, 3
      %p272 = pnand %p270, %p271
      %p273 = pneg %p272
      // Predicated region
      $region45: #{_lambda_.1} parent=5 // pred_check
        _
      $region46: #{_lambda_.1} parent=5 // pred_check_branch
        %275 = sbr.rel (%p272) target = $region48
      $region47: #{_lambda_.1} parent=5 // pred_region
        %s276 = ssub.s32 %s20, 1
        %s277 = smul.u32 8, %s25
        %p278 = scmp.lt.s32.totalorder %s277, 15
        %s279 = scalar_select %p278, %s277, 15
        %s280 = smul.addr %s279, 8
        %s281 = scalar_lea.vmem %s0, %s280
        %p282 = pneg %p46
        %p283 = pneg %p43
        %p284 = pneg %p67
        %p285 = pneg %p64
        %p286 = pneg %p88
        %p287 = pneg %p85
        %p288 = pneg %p109
        %p289 = pneg %p106
        %p290 = pneg %p130
        %p291 = pneg %p127
        %p292 = pneg %p151
        %p293 = pneg %p148
        %p294 = pneg %p172
        %p295 = pneg %p169
        %p296 = pneg %p198
        %p297 = pneg %p195
        %s298 = sand.u32 %s185, 1
        %s299 = scalar_lea.sflag [#allocation6], %s298
        %s300 = sand.u32 %s185, 1
        %s301 = smul.addr %s300, 64
        %s302 = scalar_lea.vmem [#allocation5], %s301
        %p303 = pneg %p224
        %p304 = pneg %p221
        %s305 = smul.u32 8, %s25
        %p306 = scmp.lt.s32.totalorder %s305, 15
        %s307 = scalar_select %p306, %s305, 15
        %s308 = smul.addr %s307, 8
        %s309 = scalar_lea.vmem %s8, %s308
        %s310 = smul.u32 8, %s25
        %p311 = scmp.lt.s32.totalorder %s310, 15
        %s312 = scalar_select %p311, %s310, 15
        %s313 = smul.addr %s312, 8
        %s314 = scalar_lea.vmem %s0, %s313
        %s315 = smul.u32 8, %s25
        %s316 = smul.u32 8, %s25
        %s317 = smul.u32 8, %s25
        %p318 = scmp.lt.s32.totalorder %s317, 15
        %s319 = scalar_select %p318, %s317, 15
        %s320 = smul.addr %s319, 8
        %s321 = scalar_lea.vmem %s8, %s320
        %s322 = smul.u32 8, %s25
        %p323 = scmp.eq.s32.totalorder %s25, 0
        // Predicated region
        $region49: #{_lambda_.1} parent=47 // pred_check
          %p324 = pneg %p323
        $region50: #{_lambda_.1} parent=47 // pred_check_branch
          %326 = sbr.rel (%p324) target = $region52
        $region51: #{_lambda_.1} parent=47 // pred_region
          %v327 = vld [vmem:[%s1] sm:$0xff]
          %328 = vst [vmem:[#allocation2] sm:$0xff] %v327
        $region52: #{_lambda_.1} parent=47 // pred_fallthru
          _
        %v329 = vld [vmem:[%s314] sm:$0xff]
        %v330 = vld [vmem:[%s314 + $0x8] sm:$0xff]
        %v331 = vld [vmem:[%s314 + $0x10] sm:$0xff]
        %v332 = vld [vmem:[%s314 + $0x18] sm:$0xff]
        %v333 = vld [vmem:[%s314 + $0x20] sm:$0xff]
        %v334 = vld [vmem:[%s314 + $0x28] sm:$0xff]
        %v335 = vld [vmem:[%s314 + $0x30] sm:$0xff]
        %v336 = vld [vmem:[%s314 + $0x38] sm:$0xff]
        %v337 = vld [vmem:[%s3] sm:$0x1]
        %339 = vset.pattern.permute.xlu0 0
        %340 = vperm.xlu0 %339, %v329
        %v341 = vpop.permute.xlu0 %340
        %344 = vset.pattern.permute.xlu0 0
        %345 = vperm.xlu0 %344, %v330
        %v346 = vpop.permute.xlu0 %345
        %349 = vset.pattern.permute.xlu0 0
        %350 = vperm.xlu0 %349, %v331
        %v351 = vpop.permute.xlu0 %350
        %354 = vset.pattern.permute.xlu0 0
        %355 = vperm.xlu0 %354, %v332
        %v356 = vpop.permute.xlu0 %355
        %359 = vset.pattern.permute.xlu0 0
        %360 = vperm.xlu0 %359, %v333
        %v361 = vpop.permute.xlu0 %360
        %364 = vset.pattern.permute.xlu0 0
        %365 = vperm.xlu0 %364, %v334
        %v366 = vpop.permute.xlu0 %365
        %369 = vset.pattern.permute.xlu0 0
        %370 = vperm.xlu0 %369, %v335
        %v371 = vpop.permute.xlu0 %370
        %374 = vset.pattern.permute.xlu0 0
        %375 = vperm.xlu0 %374, %v336
        %v376 = vpop.permute.xlu0 %375
        %v379 = vlaneseq
        %v380 = vshrl.u32 %v379, 7
        %v381 = vsub.s32 0, %v380
        %v382 = vrot.slane %v337, %v381
        %v384 = vmul.f32 %v341, %v382
        %v385 = vmul.f32 %v346, %v382
        %v386 = vmul.f32 %v351, %v382
        %v387 = vmul.f32 %v356, %v382
        %v388 = vmul.f32 %v361, %v382
        %v389 = vmul.f32 %v366, %v382
        %v390 = vmul.f32 %v371, %v382
        %v391 = vmul.f32 %v376, %v382
        %v392 = vld [vmem:[%s4] sm:$0x1]
        %v394 = vlaneseq
        %v395 = vshrl.u32 %v394, 7
        %v396 = vsub.s32 0, %v395
        %v397 = vrot.slane %v392, %v396
        %v399 = vadd.f32 %v384, %v397
        %v400 = vadd.f32 %v385, %v397
        %v401 = vadd.f32 %v386, %v397
        %v402 = vadd.f32 %v387, %v397
        %v403 = vadd.f32 %v388, %v397
        %v404 = vadd.f32 %v389, %v397
        %v405 = vadd.f32 %v390, %v397
        %v406 = vadd.f32 %v391, %v397
        %407 = vst [vmem:[#allocation3] sm:$0xff] %v399
        %408 = vst [vmem:[#allocation3 + $0x8] sm:$0xff] %v400
        %409 = vst [vmem:[#allocation3 + $0x10] sm:$0xff] %v401
        %410 = vst [vmem:[#allocation3 + $0x18] sm:$0xff] %v402
        %411 = vst [vmem:[#allocation3 + $0x20] sm:$0xff] %v403
        %412 = vst [vmem:[#allocation3 + $0x28] sm:$0xff] %v404
        %413 = vst [vmem:[#allocation3 + $0x30] sm:$0xff] %v405
        %414 = vst [vmem:[#allocation3 + $0x38] sm:$0xff] %v406
        %v415 = vld [vmem:[%s2] sm:$0xff]
        %v416 = vld [vmem:[%s2 + $0x8] sm:$0xff]
        %v417 = vld [vmem:[%s2 + $0x10] sm:$0xff]
        %v418 = vld [vmem:[%s2 + $0x18] sm:$0xff]
        %v419 = vld [vmem:[%s2 + $0x20] sm:$0xff]
        %v420 = vld [vmem:[%s2 + $0x28] sm:$0xff]
        %v421 = vld [vmem:[%s2 + $0x30] sm:$0xff]
        %v422 = vld [vmem:[%s2 + $0x38] sm:$0xff]
        %v423 = vld [vmem:[%s2 + $0x40] sm:$0xff]
        %v424 = vld [vmem:[%s2 + $0x48] sm:$0xff]
        %v425 = vld [vmem:[%s2 + $0x50] sm:$0xff]
        %v426 = vld [vmem:[%s2 + $0x58] sm:$0xff]
        %v427 = vld [vmem:[%s2 + $0x60] sm:$0xff]
        %v428 = vld [vmem:[%s2 + $0x68] sm:$0xff]
        %v429 = vld [vmem:[%s2 + $0x70] sm:$0xff]
        %v430 = vld [vmem:[%s2 + $0x78] sm:$0xff]
        %v431 = vld [vmem:[%s5] sm:$0x1]
        %v432 = vld [vmem:[#allocation4] sm:$0x1]
        %v433 = vld [vmem:[#allocation2] sm:$0xff]
        %v434 = vld [vmem:[#allocation3] sm:$0xff]
        %435 = vmatprep.subr.mxu0 0.0
        %436 = vmatpush1.msra.mxu0 %v415
        %437 = vmatprep.subr.mxu0 0.0
        %438 = vmatpush1.msra.mxu0 %v416
        %439 = vmatprep.subr.mxu0 0.0
        %440 = vmatpush1.msra.mxu0 %v417
        %441 = vmatprep.subr.mxu0 0.0
        %442 = vmatpush1.msra.mxu0 %v418
        %443 = vmatprep.subr.mxu0 0.0
        %444 = vmatpush1.msra.mxu0 %v419
        %445 = vmatprep.subr.mxu0 0.0
        %446 = vmatpush1.msra.mxu0 %v420
        %447 = vmatprep.subr.mxu0 0.0
        %448 = vmatpush1.msra.mxu0 %v421
        %449 = vmatprep.subr.mxu0 0.0
        %450 = vmatpush1.msra.mxu0 %v422
        %451 = vmatprep.subr.mxu0 0.0
        %452 = vmatpush1.msra.mxu0 %v423
        %453 = vmatprep.subr.mxu0 0.0
        %454 = vmatpush1.msra.mxu0 %v424
        %455 = vmatprep.subr.mxu0 0.0
        %456 = vmatpush1.msra.mxu0 %v425
        %457 = vmatprep.subr.mxu0 0.0
        %458 = vmatpush1.msra.mxu0 %v426
        %459 = vmatprep.subr.mxu0 0.0
        %460 = vmatpush1.msra.mxu0 %v427
        %461 = vmatprep.subr.mxu0 0.0
        %462 = vmatpush1.msra.mxu0 %v428
        %463 = vmatprep.subr.mxu0 0.0
        %464 = vmatpush1.msra.mxu0 %v429
        %465 = vmatprep.subr.mxu0 0.0
        %466 = vmatpush1.msra.mxu0 %v430
        %467 = vmatprep.subr.mxu0 0.0
        %468 = vmatpush1.msra.mxu0 0.0
        %469 = vmatprep.subr.mxu0 0.0
        %470 = vmatpush1.msra.mxu0 0.0
        %471 = vmatprep.subr.mxu0 0.0
        %472 = vmatpush1.msra.mxu0 0.0
        %473 = vmatprep.subr.mxu0 0.0
        %474 = vmatpush1.msra.mxu0 0.0
        %475 = vmatprep.subr.mxu0 0.0
        %476 = vmatpush1.msra.mxu0 0.0
        %477 = vmatprep.subr.mxu0 0.0
        %478 = vmatpush1.msra.mxu0 0.0
        %479 = vmatprep.subr.mxu0 0.0
        %480 = vmatpush1.msra.mxu0 0.0
        %481 = vmatprep.subr.mxu0 0.0
        %482 = vmatpush1.msra.mxu0 0.0
        %483 = vmatprep.subr.mxu0 0.0
        %484 = vmatpush1.msra.mxu0 0.0
        %485 = vmatprep.subr.mxu0 0.0
        %486 = vmatpush1.msra.mxu0 0.0
        %487 = vmatprep.subr.mxu0 0.0
        %488 = vmatpush1.msra.mxu0 0.0
        %489 = vmatprep.subr.mxu0 0.0
        %490 = vmatpush1.msra.mxu0 0.0
        %491 = vmatprep.subr.mxu0 0.0
        %492 = vmatpush1.msra.mxu0 0.0
        %493 = vmatprep.subr.mxu0 0.0
        %494 = vmatpush1.msra.mxu0 0.0
        %495 = vmatprep.subr.mxu0 0.0
        %496 = vmatpush1.msra.mxu0 0.0
        %497 = vmatprep.subr.mxu0 0.0
        %498 = vmatpush1.msra.mxu0 0.0
        %499 = vmatprep.mubr.f32.mxu0 0.0
        %500 = vmatmul.mubr.f32.gmra.mrb[0].mxu0 %v433
        %v501 = vpop.f32.mrb[0].mxu0
        %v502 = vadd.f32 %v434, %v501
        %v503 = vpop.f32.mrb[0].mxu0
        %504 = vdwg.mxu0
        %v505 = vtanh.pop %v502
        %506 = vst [vmem:[%s302] sm:$0xff] %v505
        %v508 = vlaneseq
        %v509 = vshrl.u32 %v508, 7
        %v510 = vsub.s32 0, %v509
        %v511 = vrot.slane %v431, %v510
        %v513 = vmul.f32 %v505, %v511
        %514 = vadd.xlane.f32.xlu0 %v513
        %v515 = vpop.xlane.xlu0 %514
        %v517 = vlaneseq
        %v518 = vshrl.u32 %v517, 7
        %v519 = vsub.s32 0, %v518
        %v520 = vrot.slane %v432, %v519
        %v522 = vadd.f32 %v515, %v520
        %vm523 = vcmask 7168
        %524 = vst.msk [vmem:[%s321] sm:$0xff] %vm523, %v522
        %s525 = scalar_lea.vmem [#allocation3], 8
        %v526 = vld [vmem:[%s525] sm:$0xff]
        %527 = vmatprep.subr.mxu0 0.0
        %528 = vmatpush1.msra.mxu0 %v415
        %529 = vmatprep.subr.mxu0 0.0
        %530 = vmatpush1.msra.mxu0 %v416
        %531 = vmatprep.subr.mxu0 0.0
        %532 = vmatpush1.msra.mxu0 %v417
        %533 = vmatprep.subr.mxu0 0.0
        %534 = vmatpush1.msra.mxu0 %v418
        %535 = vmatprep.subr.mxu0 0.0
        %536 = vmatpush1.msra.mxu0 %v419
        %537 = vmatprep.subr.mxu0 0.0
        %538 = vmatpush1.msra.mxu0 %v420
        %539 = vmatprep.subr.mxu0 0.0
        %540 = vmatpush1.msra.mxu0 %v421
        %541 = vmatprep.subr.mxu0 0.0
        %542 = vmatpush1.msra.mxu0 %v422
        %543 = vmatprep.subr.mxu0 0.0
        %544 = vmatpush1.msra.mxu0 %v423
        %545 = vmatprep.subr.mxu0 0.0
        %546 = vmatpush1.msra.mxu0 %v424
        %547 = vmatprep.subr.mxu0 0.0
        %548 = vmatpush1.msra.mxu0 %v425
        %549 = vmatprep.subr.mxu0 0.0
        %550 = vmatpush1.msra.mxu0 %v426
        %551 = vmatprep.subr.mxu0 0.0
        %552 = vmatpush1.msra.mxu0 %v427
        %553 = vmatprep.subr.mxu0 0.0
        %554 = vmatpush1.msra.mxu0 %v428
        %555 = vmatprep.subr.mxu0 0.0
        %556 = vmatpush1.msra.mxu0 %v429
        %557 = vmatprep.subr.mxu0 0.0
        %558 = vmatpush1.msra.mxu0 %v430
        %559 = vmatprep.subr.mxu0 0.0
        %560 = vmatpush1.msra.mxu0 0.0
        %561 = vmatprep.subr.mxu0 0.0
        %562 = vmatpush1.msra.mxu0 0.0
        %563 = vmatprep.subr.mxu0 0.0
        %564 = vmatpush1.msra.mxu0 0.0
        %565 = vmatprep.subr.mxu0 0.0
        %566 = vmatpush1.msra.mxu0 0.0
        %567 = vmatprep.subr.mxu0 0.0
        %568 = vmatpush1.msra.mxu0 0.0
        %569 = vmatprep.subr.mxu0 0.0
        %570 = vmatpush1.msra.mxu0 0.0
        %571 = vmatprep.subr.mxu0 0.0
        %572 = vmatpush1.msra.mxu0 0.0
        %573 = vmatprep.subr.mxu0 0.0
        %574 = vmatpush1.msra.mxu0 0.0
        %575 = vmatprep.subr.mxu0 0.0
        %576 = vmatpush1.msra.mxu0 0.0
        %577 = vmatprep.subr.mxu0 0.0
        %578 = vmatpush1.msra.mxu0 0.0
        %579 = vmatprep.subr.mxu0 0.0
        %580 = vmatpush1.msra.mxu0 0.0
        %581 = vmatprep.subr.mxu0 0.0
        %582 = vmatpush1.msra.mxu0 0.0
        %583 = vmatprep.subr.mxu0 0.0
        %584 = vmatpush1.msra.mxu0 0.0
        %585 = vmatprep.subr.mxu0 0.0
        %586 = vmatpush1.msra.mxu0 0.0
        %587 = vmatprep.subr.mxu0 0.0
        %588 = vmatpush1.msra.mxu0 0.0
        %589 = vmatprep.subr.mxu0 0.0
        %590 = vmatpush1.msra.mxu0 0.0
        %591 = vmatprep.mubr.f32.mxu0 0.0
        %592 = vmatmul.mubr.f32.gmra.mrb[0].mxu0 %v505
        %v593 = vpop.f32.mrb[0].mxu0
        %v594 = vadd.f32 %v526, %v593
        %v595 = vpop.f32.mrb[0].mxu0
        %596 = vdwg.mxu0
        %v597 = vtanh.pop %v594
        %s598 = scalar_lea.vmem %s302, 8 [#allocation5]
        %599 = vst [vmem:[%s598] sm:$0xff] %v597
        %v600 = vmul.f32 %v597, %v511
        %601 = vadd.xlane.f32.xlu0 %v600
        %v602 = vpop.xlane.xlu0 %601
        %v603 = vadd.f32 %v602, %v520
        %s604 = scalar_lea.vmem %s321, 8
        %605 = vst.msk [vmem:[%s604] sm:$0xff] %vm523, %v603
        %s606 = scalar_lea.vmem [#allocation3], 16
        %v607 = vld [vmem:[%s606] sm:$0xff]
        %608 = vmatprep.subr.mxu0 0.0
        %609 = vmatpush1.msra.mxu0 %v415
        %610 = vmatprep.subr.mxu0 0.0
        %611 = vmatpush1.msra.mxu0 %v416
        %612 = vmatprep.subr.mxu0 0.0
        %613 = vmatpush1.msra.mxu0 %v417
        %614 = vmatprep.subr.mxu0 0.0
        %615 = vmatpush1.msra.mxu0 %v418
        %616 = vmatprep.subr.mxu0 0.0
        %617 = vmatpush1.msra.mxu0 %v419
        %618 = vmatprep.subr.mxu0 0.0
        %619 = vmatpush1.msra.mxu0 %v420
        %620 = vmatprep.subr.mxu0 0.0
        %621 = vmatpush1.msra.mxu0 %v421
        %622 = vmatprep.subr.mxu0 0.0
        %623 = vmatpush1.msra.mxu0 %v422
        %624 = vmatprep.subr.mxu0 0.0
        %625 = vmatpush1.msra.mxu0 %v423
        %626 = vmatprep.subr.mxu0 0.0
        %627 = vmatpush1.msra.mxu0 %v424
        %628 = vmatprep.subr.mxu0 0.0
        %629 = vmatpush1.msra.mxu0 %v425
        %630 = vmatprep.subr.mxu0 0.0
        %631 = vmatpush1.msra.mxu0 %v426
        %632 = vmatprep.subr.mxu0 0.0
        %633 = vmatpush1.msra.mxu0 %v427
        %634 = vmatprep.subr.mxu0 0.0
        %635 = vmatpush1.msra.mxu0 %v428
        %636 = vmatprep.subr.mxu0 0.0
        %637 = vmatpush1.msra.mxu0 %v429
        %638 = vmatprep.subr.mxu0 0.0
        %639 = vmatpush1.msra.mxu0 %v430
        %640 = vmatprep.subr.mxu0 0.0
        %641 = vmatpush1.msra.mxu0 0.0
        %642 = vmatprep.subr.mxu0 0.0
        %643 = vmatpush1.msra.mxu0 0.0
        %644 = vmatprep.subr.mxu0 0.0
        %645 = vmatpush1.msra.mxu0 0.0
        %646 = vmatprep.subr.mxu0 0.0
        %647 = vmatpush1.msra.mxu0 0.0
        %648 = vmatprep.subr.mxu0 0.0
        %649 = vmatpush1.msra.mxu0 0.0
        %650 = vmatprep.subr.mxu0 0.0
        %651 = vmatpush1.msra.mxu0 0.0
        %652 = vmatprep.subr.mxu0 0.0
        %653 = vmatpush1.msra.mxu0 0.0
        %654 = vmatprep.subr.mxu0 0.0
        %655 = vmatpush1.msra.mxu0 0.0
        %656 = vmatprep.subr.mxu0 0.0
        %657 = vmatpush1.msra.mxu0 0.0
        %658 = vmatprep.subr.mxu0 0.0
        %659 = vmatpush1.msra.mxu0 0.0
        %660 = vmatprep.subr.mxu0 0.0
        %661 = vmatpush1.msra.mxu0 0.0
        %662 = vmatprep.subr.mxu0 0.0
        %663 = vmatpush1.msra.mxu0 0.0
        %664 = vmatprep.subr.mxu0 0.0
        %665 = vmatpush1.msra.mxu0 0.0
        %666 = vmatprep.subr.mxu0 0.0
        %667 = vmatpush1.msra.mxu0 0.0
        %668 = vmatprep.subr.mxu0 0.0
        %669 = vmatpush1.msra.mxu0 0.0
        %670 = vmatprep.subr.mxu0 0.0
        %671 = vmatpush1.msra.mxu0 0.0
        %672 = vmatprep.mubr.f32.mxu0 0.0
        %673 = vmatmul.mubr.f32.gmra.mrb[0].mxu0 %v597
        %v674 = vpop.f32.mrb[0].mxu0
        %v675 = vadd.f32 %v607, %v674
        %v676 = vpop.f32.mrb[0].mxu0
        %677 = vdwg.mxu0
        %v678 = vtanh.pop %v675
        %s679 = scalar_lea.vmem %s302, 16 [#allocation5]
        %680 = vst [vmem:[%s679] sm:$0xff] %v678
        %v681 = vmul.f32 %v678, %v511
        %682 = vadd.xlane.f32.xlu0 %v681
        %v683 = vpop.xlane.xlu0 %682
        %v684 = vadd.f32 %v683, %v520
        %s685 = scalar_lea.vmem %s321, 16
        %686 = vst.msk [vmem:[%s685] sm:$0xff] %vm523, %v684
        %s687 = scalar_lea.vmem [#allocation3], 24
        %v688 = vld [vmem:[%s687] sm:$0xff]
        %689 = vmatprep.subr.mxu0 0.0
        %690 = vmatpush1.msra.mxu0 %v415
        %691 = vmatprep.subr.mxu0 0.0
        %692 = vmatpush1.msra.mxu0 %v416
        %693 = vmatprep.subr.mxu0 0.0
        %694 = vmatpush1.msra.mxu0 %v417
        %695 = vmatprep.subr.mxu0 0.0
        %696 = vmatpush1.msra.mxu0 %v418
        %697 = vmatprep.subr.mxu0 0.0
        %698 = vmatpush1.msra.mxu0 %v419
        %699 = vmatprep.subr.mxu0 0.0
        %700 = vmatpush1.msra.mxu0 %v420
        %701 = vmatprep.subr.mxu0 0.0
        %702 = vmatpush1.msra.mxu0 %v421
        %703 = vmatprep.subr.mxu0 0.0
        %704 = vmatpush1.msra.mxu0 %v422
        %705 = vmatprep.subr.mxu0 0.0
        %706 = vmatpush1.msra.mxu0 %v423
        %707 = vmatprep.subr.mxu0 0.0
        %708 = vmatpush1.msra.mxu0 %v424
        %709 = vmatprep.subr.mxu0 0.0
        %710 = vmatpush1.msra.mxu0 %v425
        %711 = vmatprep.subr.mxu0 0.0
        %712 = vmatpush1.msra.mxu0 %v426
        %713 = vmatprep.subr.mxu0 0.0
        %714 = vmatpush1.msra.mxu0 %v427
        %715 = vmatprep.subr.mxu0 0.0
        %716 = vmatpush1.msra.mxu0 %v428
        %717 = vmatprep.subr.mxu0 0.0
        %718 = vmatpush1.msra.mxu0 %v429
        %719 = vmatprep.subr.mxu0 0.0
        %720 = vmatpush1.msra.mxu0 %v430
        %721 = vmatprep.subr.mxu0 0.0
        %722 = vmatpush1.msra.mxu0 0.0
        %723 = vmatprep.subr.mxu0 0.0
        %724 = vmatpush1.msra.mxu0 0.0
        %725 = vmatprep.subr.mxu0 0.0
        %726 = vmatpush1.msra.mxu0 0.0
        %727 = vmatprep.subr.mxu0 0.0
        %728 = vmatpush1.msra.mxu0 0.0
        %729 = vmatprep.subr.mxu0 0.0
        %730 = vmatpush1.msra.mxu0 0.0
        %731 = vmatprep.subr.mxu0 0.0
        %732 = vmatpush1.msra.mxu0 0.0
        %733 = vmatprep.subr.mxu0 0.0
        %734 = vmatpush1.msra.mxu0 0.0
        %735 = vmatprep.subr.mxu0 0.0
        %736 = vmatpush1.msra.mxu0 0.0
        %737 = vmatprep.subr.mxu0 0.0
        %738 = vmatpush1.msra.mxu0 0.0
        %739 = vmatprep.subr.mxu0 0.0
        %740 = vmatpush1.msra.mxu0 0.0
        %741 = vmatprep.subr.mxu0 0.0
        %742 = vmatpush1.msra.mxu0 0.0
        %743 = vmatprep.subr.mxu0 0.0
        %744 = vmatpush1.msra.mxu0 0.0
        %745 = vmatprep.subr.mxu0 0.0
        %746 = vmatpush1.msra.mxu0 0.0
        %747 = vmatprep.subr.mxu0 0.0
        %748 = vmatpush1.msra.mxu0 0.0
        %749 = vmatprep.subr.mxu0 0.0
        %750 = vmatpush1.msra.mxu0 0.0
        %751 = vmatprep.subr.mxu0 0.0
        %752 = vmatpush1.msra.mxu0 0.0
        %753 = vmatprep.mubr.f32.mxu0 0.0
        %754 = vmatmul.mubr.f32.gmra.mrb[0].mxu0 %v678
        %v755 = vpop.f32.mrb[0].mxu0
        %v756 = vadd.f32 %v688, %v755
        %v757 = vpop.f32.mrb[0].mxu0
        %758 = vdwg.mxu0
        %v759 = vtanh.pop %v756
        %s760 = scalar_lea.vmem %s302, 24 [#allocation5]
        %761 = vst [vmem:[%s760] sm:$0xff] %v759
        %v762 = vmul.f32 %v759, %v511
        %763 = vadd.xlane.f32.xlu0 %v762
        %v764 = vpop.xlane.xlu0 %763
        %v765 = vadd.f32 %v764, %v520
        %s766 = scalar_lea.vmem %s321, 24
        %767 = vst.msk [vmem:[%s766] sm:$0xff] %vm523, %v765
        %s768 = scalar_lea.vmem [#allocation3], 32
        %v769 = vld [vmem:[%s768] sm:$0xff]
        %770 = vmatprep.subr.mxu0 0.0
        %771 = vmatpush1.msra.mxu0 %v415
        %772 = vmatprep.subr.mxu0 0.0
        %773 = vmatpush1.msra.mxu0 %v416
        %774 = vmatprep.subr.mxu0 0.0
        %775 = vmatpush1.msra.mxu0 %v417
        %776 = vmatprep.subr.mxu0 0.0
        %777 = vmatpush1.msra.mxu0 %v418
        %778 = vmatprep.subr.mxu0 0.0
        %779 = vmatpush1.msra.mxu0 %v419
        %780 = vmatprep.subr.mxu0 0.0
        %781 = vmatpush1.msra.mxu0 %v420
        %782 = vmatprep.subr.mxu0 0.0
        %783 = vmatpush1.msra.mxu0 %v421
        %784 = vmatprep.subr.mxu0 0.0
        %785 = vmatpush1.msra.mxu0 %v422
        %786 = vmatprep.subr.mxu0 0.0
        %787 = vmatpush1.msra.mxu0 %v423
        %788 = vmatprep.subr.mxu0 0.0
        %789 = vmatpush1.msra.mxu0 %v424
        %790 = vmatprep.subr.mxu0 0.0
        %791 = vmatpush1.msra.mxu0 %v425
        %792 = vmatprep.subr.mxu0 0.0
        %793 = vmatpush1.msra.mxu0 %v426
        %794 = vmatprep.subr.mxu0 0.0
        %795 = vmatpush1.msra.mxu0 %v427
        %796 = vmatprep.subr.mxu0 0.0
        %797 = vmatpush1.msra.mxu0 %v428
        %798 = vmatprep.subr.mxu0 0.0
        %799 = vmatpush1.msra.mxu0 %v429
        %800 = vmatprep.subr.mxu0 0.0
        %801 = vmatpush1.msra.mxu0 %v430
        %802 = vmatprep.subr.mxu0 0.0
        %803 = vmatpush1.msra.mxu0 0.0
        %804 = vmatprep.subr.mxu0 0.0
        %805 = vmatpush1.msra.mxu0 0.0
        %806 = vmatprep.subr.mxu0 0.0
        %807 = vmatpush1.msra.mxu0 0.0
        %808 = vmatprep.subr.mxu0 0.0
        %809 = vmatpush1.msra.mxu0 0.0
        %810 = vmatprep.subr.mxu0 0.0
        %811 = vmatpush1.msra.mxu0 0.0
        %812 = vmatprep.subr.mxu0 0.0
        %813 = vmatpush1.msra.mxu0 0.0
        %814 = vmatprep.subr.mxu0 0.0
        %815 = vmatpush1.msra.mxu0 0.0
        %816 = vmatprep.subr.mxu0 0.0
        %817 = vmatpush1.msra.mxu0 0.0
        %818 = vmatprep.subr.mxu0 0.0
        %819 = vmatpush1.msra.mxu0 0.0
        %820 = vmatprep.subr.mxu0 0.0
        %821 = vmatpush1.msra.mxu0 0.0
        %822 = vmatprep.subr.mxu0 0.0
        %823 = vmatpush1.msra.mxu0 0.0
        %824 = vmatprep.subr.mxu0 0.0
        %825 = vmatpush1.msra.mxu0 0.0
        %826 = vmatprep.subr.mxu0 0.0
        %827 = vmatpush1.msra.mxu0 0.0
        %828 = vmatprep.subr.mxu0 0.0
        %829 = vmatpush1.msra.mxu0 0.0
        %830 = vmatprep.subr.mxu0 0.0
        %831 = vmatpush1.msra.mxu0 0.0
        %832 = vmatprep.subr.mxu0 0.0
        %833 = vmatpush1.msra.mxu0 0.0
        %834 = vmatprep.mubr.f32.mxu0 0.0
        %835 = vmatmul.mubr.f32.gmra.mrb[0].mxu0 %v759
        %v836 = vpop.f32.mrb[0].mxu0
        %v837 = vadd.f32 %v769, %v836
        %v838 = vpop.f32.mrb[0].mxu0
        %839 = vdwg.mxu0
        %v840 = vtanh.pop %v837
        %s841 = scalar_lea.vmem %s302, 32 [#allocation5]
        %842 = vst [vmem:[%s841] sm:$0xff] %v840
        %v843 = vmul.f32 %v840, %v511
        %844 = vadd.xlane.f32.xlu0 %v843
        %v845 = vpop.xlane.xlu0 %844
        %v846 = vadd.f32 %v845, %v520
        %s847 = scalar_lea.vmem %s321, 32
        %848 = vst.msk [vmem:[%s847] sm:$0xff] %vm523, %v846
        %s849 = scalar_lea.vmem [#allocation3], 40
        %v850 = vld [vmem:[%s849] sm:$0xff]
        %851 = vmatprep.subr.mxu0 0.0
        %852 = vmatpush1.msra.mxu0 %v415
        %853 = vmatprep.subr.mxu0 0.0
        %854 = vmatpush1.msra.mxu0 %v416
        %855 = vmatprep.subr.mxu0 0.0
        %856 = vmatpush1.msra.mxu0 %v417
        %857 = vmatprep.subr.mxu0 0.0
        %858 = vmatpush1.msra.mxu0 %v418
        %859 = vmatprep.subr.mxu0 0.0
        %860 = vmatpush1.msra.mxu0 %v419
        %861 = vmatprep.subr.mxu0 0.0
        %862 = vmatpush1.msra.mxu0 %v420
        %863 = vmatprep.subr.mxu0 0.0
        %864 = vmatpush1.msra.mxu0 %v421
        %865 = vmatprep.subr.mxu0 0.0
        %866 = vmatpush1.msra.mxu0 %v422
        %867 = vmatprep.subr.mxu0 0.0
        %868 = vmatpush1.msra.mxu0 %v423
        %869 = vmatprep.subr.mxu0 0.0
        %870 = vmatpush1.msra.mxu0 %v424
        %871 = vmatprep.subr.mxu0 0.0
        %872 = vmatpush1.msra.mxu0 %v425
        %873 = vmatprep.subr.mxu0 0.0
        %874 = vmatpush1.msra.mxu0 %v426
        %875 = vmatprep.subr.mxu0 0.0
        %876 = vmatpush1.msra.mxu0 %v427
        %877 = vmatprep.subr.mxu0 0.0
        %878 = vmatpush1.msra.mxu0 %v428
        %879 = vmatprep.subr.mxu0 0.0
        %880 = vmatpush1.msra.mxu0 %v429
        %881 = vmatprep.subr.mxu0 0.0
        %882 = vmatpush1.msra.mxu0 %v430
        %883 = vmatprep.subr.mxu0 0.0
        %884 = vmatpush1.msra.mxu0 0.0
        %885 = vmatprep.subr.mxu0 0.0
        %886 = vmatpush1.msra.mxu0 0.0
        %887 = vmatprep.subr.mxu0 0.0
        %888 = vmatpush1.msra.mxu0 0.0
        %889 = vmatprep.subr.mxu0 0.0
        %890 = vmatpush1.msra.mxu0 0.0
        %891 = vmatprep.subr.mxu0 0.0
        %892 = vmatpush1.msra.mxu0 0.0
        %893 = vmatprep.subr.mxu0 0.0
        %894 = vmatpush1.msra.mxu0 0.0
        %895 = vmatprep.subr.mxu0 0.0
        %896 = vmatpush1.msra.mxu0 0.0
        %897 = vmatprep.subr.mxu0 0.0
        %898 = vmatpush1.msra.mxu0 0.0
        %899 = vmatprep.subr.mxu0 0.0
        %900 = vmatpush1.msra.mxu0 0.0
        %901 = vmatprep.subr.mxu0 0.0
        %902 = vmatpush1.msra.mxu0 0.0
        %903 = vmatprep.subr.mxu0 0.0
        %904 = vmatpush1.msra.mxu0 0.0
        %905 = vmatprep.subr.mxu0 0.0
        %906 = vmatpush1.msra.mxu0 0.0
        %907 = vmatprep.subr.mxu0 0.0
        %908 = vmatpush1.msra.mxu0 0.0
        %909 = vmatprep.subr.mxu0 0.0
        %910 = vmatpush1.msra.mxu0 0.0
        %911 = vmatprep.subr.mxu0 0.0
        %912 = vmatpush1.msra.mxu0 0.0
        %913 = vmatprep.subr.mxu0 0.0
        %914 = vmatpush1.msra.mxu0 0.0
        %915 = vmatprep.mubr.f32.mxu0 0.0
        %916 = vmatmul.mubr.f32.gmra.mrb[0].mxu0 %v840
        %v917 = vpop.f32.mrb[0].mxu0
        %v918 = vadd.f32 %v850, %v917
        %v919 = vpop.f32.mrb[0].mxu0
        %920 = vdwg.mxu0
        %v921 = vtanh.pop %v918
        %s922 = scalar_lea.vmem %s302, 40 [#allocation5]
        %923 = vst [vmem:[%s922] sm:$0xff] %v921
        %v924 = vmul.f32 %v921, %v511
        %925 = vadd.xlane.f32.xlu0 %v924
        %v926 = vpop.xlane.xlu0 %925
        %v927 = vadd.f32 %v926, %v520
        %s928 = scalar_lea.vmem %s321, 40
        %929 = vst.msk [vmem:[%s928] sm:$0xff] %vm523, %v927
        %s930 = scalar_lea.vmem [#allocation3], 48
        %v931 = vld [vmem:[%s930] sm:$0xff]
        %932 = vmatprep.subr.mxu0 0.0
        %933 = vmatpush1.msra.mxu0 %v415
        %934 = vmatprep.subr.mxu0 0.0
        %935 = vmatpush1.msra.mxu0 %v416
        %936 = vmatprep.subr.mxu0 0.0
        %937 = vmatpush1.msra.mxu0 %v417
        %938 = vmatprep.subr.mxu0 0.0
        %939 = vmatpush1.msra.mxu0 %v418
        %940 = vmatprep.subr.mxu0 0.0
        %941 = vmatpush1.msra.mxu0 %v419
        %942 = vmatprep.subr.mxu0 0.0
        %943 = vmatpush1.msra.mxu0 %v420
        %944 = vmatprep.subr.mxu0 0.0
        %945 = vmatpush1.msra.mxu0 %v421
        %946 = vmatprep.subr.mxu0 0.0
        %947 = vmatpush1.msra.mxu0 %v422
        %948 = vmatprep.subr.mxu0 0.0
        %949 = vmatpush1.msra.mxu0 %v423
        %950 = vmatprep.subr.mxu0 0.0
        %951 = vmatpush1.msra.mxu0 %v424
        %952 = vmatprep.subr.mxu0 0.0
        %953 = vmatpush1.msra.mxu0 %v425
        %954 = vmatprep.subr.mxu0 0.0
        %955 = vmatpush1.msra.mxu0 %v426
        %956 = vmatprep.subr.mxu0 0.0
        %957 = vmatpush1.msra.mxu0 %v427
        %958 = vmatprep.subr.mxu0 0.0
        %959 = vmatpush1.msra.mxu0 %v428
        %960 = vmatprep.subr.mxu0 0.0
        %961 = vmatpush1.msra.mxu0 %v429
        %962 = vmatprep.subr.mxu0 0.0
        %963 = vmatpush1.msra.mxu0 %v430
        %964 = vmatprep.subr.mxu0 0.0
        %965 = vmatpush1.msra.mxu0 0.0
        %966 = vmatprep.subr.mxu0 0.0
        %967 = vmatpush1.msra.mxu0 0.0
        %968 = vmatprep.subr.mxu0 0.0
        %969 = vmatpush1.msra.mxu0 0.0
        %970 = vmatprep.subr.mxu0 0.0
        %971 = vmatpush1.msra.mxu0 0.0
        %972 = vmatprep.subr.mxu0 0.0
        %973 = vmatpush1.msra.mxu0 0.0
        %974 = vmatprep.subr.mxu0 0.0
        %975 = vmatpush1.msra.mxu0 0.0
        %976 = vmatprep.subr.mxu0 0.0
        %977 = vmatpush1.msra.mxu0 0.0
        %978 = vmatprep.subr.mxu0 0.0
        %979 = vmatpush1.msra.mxu0 0.0
        %980 = vmatprep.subr.mxu0 0.0
        %981 = vmatpush1.msra.mxu0 0.0
        %982 = vmatprep.subr.mxu0 0.0
        %983 = vmatpush1.msra.mxu0 0.0
        %984 = vmatprep.subr.mxu0 0.0
        %985 = vmatpush1.msra.mxu0 0.0
        %986 = vmatprep.subr.mxu0 0.0
        %987 = vmatpush1.msra.mxu0 0.0
        %988 = vmatprep.subr.mxu0 0.0
        %989 = vmatpush1.msra.mxu0 0.0
        %990 = vmatprep.subr.mxu0 0.0
        %991 = vmatpush1.msra.mxu0 0.0
        %992 = vmatprep.subr.mxu0 0.0
        %993 = vmatpush1.msra.mxu0 0.0
        %994 = vmatprep.subr.mxu0 0.0
        %995 = vmatpush1.msra.mxu0 0.0
        %996 = vmatprep.mubr.f32.mxu0 0.0
        %997 = vmatmul.mubr.f32.gmra.mrb[0].mxu0 %v921
        %v998 = vpop.f32.mrb[0].mxu0
        %v999 = vadd.f32 %v931, %v998
        %v1000 = vpop.f32.mrb[0].mxu0
        %1001 = vdwg.mxu0
        %v1002 = vtanh.pop %v999
        %s1003 = scalar_lea.vmem %s302, 48 [#allocation5]
        %1004 = vst [vmem:[%s1003] sm:$0xff] %v1002
        %v1005 = vmul.f32 %v1002, %v511
        %1006 = vadd.xlane.f32.xlu0 %v1005
        %v1007 = vpop.xlane.xlu0 %1006
        %v1008 = vadd.f32 %v1007, %v520
        %s1009 = scalar_lea.vmem %s321, 48
        %1010 = vst.msk [vmem:[%s1009] sm:$0xff] %vm523, %v1008
        %s1011 = scalar_lea.vmem [#allocation3], 56
        %v1012 = vld [vmem:[%s1011] sm:$0xff]
        %1013 = vmatprep.subr.mxu0 0.0
        %1014 = vmatpush1.msra.mxu0 %v415
        %1015 = vmatprep.subr.mxu0 0.0
        %1016 = vmatpush1.msra.mxu0 %v416
        %1017 = vmatprep.subr.mxu0 0.0
        %1018 = vmatpush1.msra.mxu0 %v417
        %1019 = vmatprep.subr.mxu0 0.0
        %1020 = vmatpush1.msra.mxu0 %v418
        %1021 = vmatprep.subr.mxu0 0.0
        %1022 = vmatpush1.msra.mxu0 %v419
        %1023 = vmatprep.subr.mxu0 0.0
        %1024 = vmatpush1.msra.mxu0 %v420
        %1025 = vmatprep.subr.mxu0 0.0
        %1026 = vmatpush1.msra.mxu0 %v421
        %1027 = vmatprep.subr.mxu0 0.0
        %1028 = vmatpush1.msra.mxu0 %v422
        %1029 = vmatprep.subr.mxu0 0.0
        %1030 = vmatpush1.msra.mxu0 %v423
        %1031 = vmatprep.subr.mxu0 0.0
        %1032 = vmatpush1.msra.mxu0 %v424
        %1033 = vmatprep.subr.mxu0 0.0
        %1034 = vmatpush1.msra.mxu0 %v425
        %1035 = vmatprep.subr.mxu0 0.0
        %1036 = vmatpush1.msra.mxu0 %v426
        %1037 = vmatprep.subr.mxu0 0.0
        %1038 = vmatpush1.msra.mxu0 %v427
        %1039 = vmatprep.subr.mxu0 0.0
        %1040 = vmatpush1.msra.mxu0 %v428
        %1041 = vmatprep.subr.mxu0 0.0
        %1042 = vmatpush1.msra.mxu0 %v429
        %1043 = vmatprep.subr.mxu0 0.0
        %1044 = vmatpush1.msra.mxu0 %v430
        %1045 = vmatprep.subr.mxu0 0.0
        %1046 = vmatpush1.msra.mxu0 0.0
        %1047 = vmatprep.subr.mxu0 0.0
        %1048 = vmatpush1.msra.mxu0 0.0
        %1049 = vmatprep.subr.mxu0 0.0
        %1050 = vmatpush1.msra.mxu0 0.0
        %1051 = vmatprep.subr.mxu0 0.0
        %1052 = vmatpush1.msra.mxu0 0.0
        %1053 = vmatprep.subr.mxu0 0.0
        %1054 = vmatpush1.msra.mxu0 0.0
        %1055 = vmatprep.subr.mxu0 0.0
        %1056 = vmatpush1.msra.mxu0 0.0
        %1057 = vmatprep.subr.mxu0 0.0
        %1058 = vmatpush1.msra.mxu0 0.0
        %1059 = vmatprep.subr.mxu0 0.0
        %1060 = vmatpush1.msra.mxu0 0.0
        %1061 = vmatprep.subr.mxu0 0.0
        %1062 = vmatpush1.msra.mxu0 0.0
        %1063 = vmatprep.subr.mxu0 0.0
        %1064 = vmatpush1.msra.mxu0 0.0
        %1065 = vmatprep.subr.mxu0 0.0
        %1066 = vmatpush1.msra.mxu0 0.0
        %1067 = vmatprep.subr.mxu0 0.0
        %1068 = vmatpush1.msra.mxu0 0.0
        %1069 = vmatprep.subr.mxu0 0.0
        %1070 = vmatpush1.msra.mxu0 0.0
        %1071 = vmatprep.subr.mxu0 0.0
        %1072 = vmatpush1.msra.mxu0 0.0
        %1073 = vmatprep.subr.mxu0 0.0
        %1074 = vmatpush1.msra.mxu0 0.0
        %1075 = vmatprep.subr.mxu0 0.0
        %1076 = vmatpush1.msra.mxu0 0.0
        %1077 = vmatprep.mubr.f32.mxu0 0.0
        %1078 = vmatmul.mubr.f32.gmra.mrb[0].mxu0 %v1002
        %v1079 = vpop.f32.mrb[0].mxu0
        %v1080 = vadd.f32 %v1012, %v1079
        %v1081 = vpop.f32.mrb[0].mxu0
        %1082 = vdwg.mxu0
        %v1083 = vtanh.pop %v1080
        %s1084 = scalar_lea.vmem %s302, 56 [#allocation5]
        %1085 = vst [vmem:[%s1084] sm:$0xff] %v1083
        %v1086 = vmul.f32 %v1083, %v511
        %1087 = vadd.xlane.f32.xlu0 %v1086
        %v1088 = vpop.xlane.xlu0 %1087
        %v1089 = vadd.f32 %v1088, %v520
        %s1090 = scalar_lea.vmem %s321, 56
        %1091 = vst.msk [vmem:[%s1090] sm:$0xff] %vm523, %v1089
        %1092 = vst [vmem:[#allocation2] sm:$0xff] %v1083
        %s1093 = sand.u32 %s185, 1
        %s1094 = scalar_lea.sflag [#allocation6], %s1093
        %s1095 = sand.u32 %s185, 1
        %s1096 = smul.addr %s1095, 64
        %s1097 = scalar_lea.vmem [#allocation5], %s1096
        %s1098 = smul.u32 8, %s25
        %p1099 = scmp.lt.s32.totalorder %s1098, 15
        %s1100 = scalar_select %p1099, %s1098, 15
        %s1101 = smul.addr %s1100, 8
        %s1102 = scalar_lea.vmem %s8, %s1101
        // Predicated region
        $region53: #{_lambda_.1} parent=47 // pred_check
          %p1103 = pneg %p195
        $region54: #{_lambda_.1} parent=47 // pred_check_branch
          %1105 = sbr.rel (%p1103) target = $region56
        $region55: #{_lambda_.1} parent=47 // pred_region
          %s1106 = smul.u32 8, %s25
          %s1108 = ssub.s32 1024, 1024
          %1109 = vsyncadd %s1094, %s1108
          %s1110 = smul.addr %s1106, 128
          %s1111 = scalar_lea.hbm %s7, %s1110
          %s1112 = sshll.u32 %s1097, 4
          %s1113 = int_to_ptr.vmem [resolvable:$true] %s1112
          %1118 = dma.vmem_to_hbm [thread:$0]  %s1113, 1024, %s1111, %s1094, 128, 128, 8
        $region56: #{_lambda_.1} parent=47 // pred_fallthru
          _
        // Predicated region
        $region57: #{_lambda_.1} parent=47 // pred_check
          %p1119 = pneg %p221
        $region58: #{_lambda_.1} parent=47 // pred_check_branch
          %1121 = sbr.rel (%p1119) target = $region60
        $region59: #{_lambda_.1} parent=47 // pred_region
          %s1122 = smul.u32 8, %s25
        $region60: #{_lambda_.1} parent=47 // pred_fallthru
          _
      $region48: #{_lambda_.1} parent=5 // pred_fallthru
        _
      %p1123 = scmp.le.s32.totalorder 2, %s20
      // Predicated region
      $region61: #{_lambda_.1} parent=5 // pred_check
        %p1124 = pneg %p1123
      $region62: #{_lambda_.1} parent=5 // pred_check_branch
        %1126 = sbr.rel (%p1124) target = $region64
      $region63: #{_lambda_.1} parent=5 // pred_region
        %s1127 = ssub.s32 %s20, 2
        // Predicated region
        $region65: #{_lambda_.1} parent=63 // pred_check
          %p1128 = pneg %p201
        $region66: #{_lambda_.1} parent=63 // pred_check_branch
          %1130 = sbr.rel (%p1128) target = $region68
        $region67: #{_lambda_.1} parent=63 // pred_region
          %s1131 = sand.u32 %s186, 1
          %s1132 = scalar_lea.sflag [#allocation6], %s1131
          %s1133 = sand.u32 %s186, 1
          %s1134 = smul.addr %s1133, 64
          %s1135 = scalar_lea.vmem [#allocation5], %s1134
          %1136 = dma.done %s1132, 1024
        $region68: #{_lambda_.1} parent=63 // pred_fallthru
          _
        // Predicated region
        $region69: #{_lambda_.1} parent=63 // pred_check
          %p1137 = pneg %p227
        $region70: #{_lambda_.1} parent=63 // pred_check_branch
          %1139 = sbr.rel (%p1137) target = $region72
        $region71: #{_lambda_.1} parent=63 // pred_region
          %s1140 = smul.u32 8, %s26
          %p1141 = scmp.lt.s32.totalorder %s1140, 15
          %s1142 = scalar_select %p1141, %s1140, 15
          %s1143 = smul.addr %s1142, 8
          %s1144 = scalar_lea.vmem %s8, %s1143
        $region72: #{_lambda_.1} parent=63 // pred_fallthru
          _
      $region64: #{_lambda_.1} parent=5 // pred_fallthru
        _
    $region6: #{_lambda_.1} parent=1 // loop_footer
      %s24 = sadd.s32 1, %s20
    $region7: #{_lambda_.1} parent=1 // loop_footer_branch
      %19 = sbr.rel target = $region3
    $region8: #{_lambda_.1} parent=1 // loop_exit
      _
    %1145 = vsyncpa [#allocation6], 1
    %s1146 = scalar_lea.sflag [#allocation6], 1
    %1147 = vsyncpa %s1146, 1

</llo_original>
